<compile_context>
chip_gen: v7x
topology: tpu7x:2x2x1
jax: 0.10.0
libtpu: 0.0.40
codegen_flags: <defaults>
</compile_context>

<pallas_src>
import math

import jax
import jax.numpy as jnp
from jax.experimental import pallas as pl
from jax.experimental.pallas import tpu as pltpu

HIDDEN = 64
NUM_HEADS = 2
HEAD_DIM = HIDDEN // NUM_HEADS  # 32


# ---------------------------------------------------------------------------
# Hardware queries (best effort, safe fallbacks).
# ---------------------------------------------------------------------------
def _vmem_capacity_bytes():
    try:
        info = pltpu.get_tpu_info()
        cap = int(getattr(info, "vmem_capacity_bytes", 0) or 0)
        if cap > 0:
            return cap
    except Exception:
        pass
    return 64 * 1024 * 1024  # conservative: v7x per-core VMEM


def _num_tensorcores():
    try:
        info = pltpu.get_tpu_info()
        for name in ("num_cores", "num_tensorcores", "cores_per_chip"):
            v = getattr(info, name, None)
            if v:
                return int(v)
    except Exception:
        pass
    try:
        return int(getattr(jax.devices()[0], "num_cores", 1) or 1)
    except Exception:
        return 1


# ---------------------------------------------------------------------------
# Block-size / VMEM-budget selection.
# ---------------------------------------------------------------------------
def _vmem_footprint_bytes(bt, tq, seq, vis, in_itemsize,
                          out_itemsize=4, probs_itemsize=2):
    h = HIDDEN
    b = 0
    b += 2 * 2 * bt * seq * h * in_itemsize           # hs + qx blocks, double-buffered
    b += 2 * bt * tq * h * out_itemsize                # out block, double-buffered
    if vis:
        b += 2 * bt * NUM_HEADS * tq * seq * probs_itemsize  # probs block, dbl-buffered
    b += bt * seq * h * 2 + 2 * bt * (2 * seq) * h * 2        # scratch: Q, Kbd, Vbd (bf16)
    b += 4 * bt * tq * (2 * seq) * 4                   # live f32 scores / exp / probs
    b += 512 * 1024                                    # weights (dbl-buffered) + slack
    return b


def _choose_blocks(batch, seq, vis, in_itemsize, block_q=None):
    """Pick (bt, tq): batch block and query-tile sizes.

    tq bounds the vis probs block and live score vregs (flash-style blocking
    over query-S).  bt is the largest divisor of B whose double-buffered
    footprint fits a VMEM budget derived from the chip; single-TC parts
    (v5e/v6e) get the whole batch, multi-TC parts keep >= num_cores batch
    steps so the "parallel" batch axis can be sharded.
    """
    budget = int(0.70 * _vmem_capacity_bytes())
    cores = _num_tensorcores()

    if block_q is not None:
        tq = int(block_q)
        assert seq % tq == 0 and (tq == seq or tq % 16 == 0)
    else:
        tq = seq
        if seq > 512:
            for cand in (512, 256, 128, 64, 32, 16):
                if seq % cand == 0:
                    tq = cand
                    break

    max_bt = batch if (cores <= 1 or batch < cores) else batch // cores
    bt = 1
    for cand in range(max_bt, 0, -1):
        if batch % cand == 0 and \
                _vmem_footprint_bytes(cand, tq, seq, vis, in_itemsize) <= budget:
            bt = cand
            break

    # If even bt == 1 blows the budget, shrink the query tile further.
    while (_vmem_footprint_bytes(bt, tq, seq, vis, in_itemsize) > budget
           and tq > 16 and tq % 32 == 0 and seq % (tq // 2) == 0):
        tq //= 2
    return bt, tq


# ---------------------------------------------------------------------------
# Kernel.
# ---------------------------------------------------------------------------
def _make_attention_kernel(vis, bt, tq, seq, lane_dense):
    scale = 1.0 / math.sqrt(HEAD_DIM)

    def kernel(hs_ref, qx_ref, wqv_ref, bqv_ref, wk_ref, bk_ref, wo_ref, bo_ref,
               *rest):
        if vis:
            out_ref, probs_ref, q_sc, kpad_sc, vpad_sc = rest
        else:
            out_ref, q_sc, kpad_sc, vpad_sc = rest

        qt = pl.program_id(1)

        # ------------------------------------------------------------------
        # Once per batch block (first query tile): project Q, K, V over the
        # full sequence and cache them in VMEM scratch.  Q and V share one
        # fused 128-lane matmul.  K and V are stored head block-diagonal:
        # rows [0:S] carry head-0 channels (lanes 0:31, rest zero), rows
        # [S:2S] carry head-1 channels (lanes 32:63) -> both heads' QK^T and
        # P@V run as single K=64 contractions with no per-head lane slicing.
        # ------------------------------------------------------------------
        @pl.when(qt == 0)
        def _project():
            rows = bt * seq
            hs = hs_ref[...].reshape(rows, HIDDEN).astype(jnp.bfloat16)
            qxr = qx_ref[...].reshape(rows, HIDDEN).astype(jnp.bfloat16)

            qv = jnp.dot(qxr, wqv_ref[...],
                         preferred_element_type=jnp.float32) + bqv_ref[...]
            k = jnp.dot(hs, wk_ref[...],
                        preferred_element_type=jnp.float32) + bk_ref[...]

            # Fold the 1/sqrt(d_head) score scale into Q.
            q3 = (qv[:, :HIDDEN] * scale).astype(jnp.bfloat16).reshape(
                bt, seq, HIDDEN)
            v3 = qv[:, HIDDEN:].astype(jnp.bfloat16).reshape(bt, seq, HIDDEN)
            k3 = k.astype(jnp.bfloat16).reshape(bt, seq, HIDDEN)

            lane = jax.lax.broadcasted_iota(jnp.int32, (1, 1, HIDDEN), 2)
            m0 = (lane < HEAD_DIM).astype(jnp.bfloat16)
            m1 = (lane >= HEAD_DIM).astype(jnp.bfloat16)

            q_sc[...] = q3
            kpad_sc[...] = jnp.concatenate([k3 * m0, k3 * m1], axis=1)
            vpad_sc[...] = jnp.concatenate([v3 * m0, v3 * m1], axis=1)

        # ------------------------------------------------------------------
        # Per query tile.
        # ------------------------------------------------------------------
        q_start = pl.multiple_of(qt * tq, tq)
        qh = q_sc[:, pl.ds(q_start, tq), :]                       # (bt,tq,H) bf16

        # Both heads' scores in one matmul: cols [0:S] head 0, [S:2S] head 1.
        scores = jnp.einsum('bqd,bkd->bqk', qh, kpad_sc[...],
                            preferred_element_type=jnp.float32)   # (bt,tq,2S)

        def softmax(s):
            # f32 softmax math (v5e has no bf16 VPU/EUP).  approx reciprocal
            # runs on the EUP slot; probs sum to 1 +- ~1e-3.
            s = s - jnp.max(s, axis=-1, keepdims=True)
            e = jnp.exp(s)
            return e * pl.reciprocal(jnp.sum(e, axis=-1, keepdims=True),
                                     approx=True)

        p0 = softmax(scores[:, :, :seq])                          # (bt,tq,S)
        p1 = softmax(scores[:, :, seq:])

        if vis:
            probs_ref[:, 0, :, :] = p0.astype(probs_ref.dtype)
            probs_ref[:, 1, :, :] = p1.astype(probs_ref.dtype)

        probs = jnp.concatenate([p0, p1], axis=-1).astype(jnp.bfloat16)

        # Both heads' P@V in one matmul; output lanes 0:31 are head-0 context,
        # 32:63 head-1 -> already the layout the output projection expects.
        ctx = jnp.einsum('bqk,bkd->bqd', probs, vpad_sc[...],
                         preferred_element_type=jnp.float32)      # (bt,tq,H)

        outv = jnp.dot(ctx.reshape(bt * tq, HIDDEN).astype(jnp.bfloat16),
                       wo_ref[...],
                       preferred_element_type=jnp.float32) + bo_ref[...]

        if lane_dense:
            out_ref[...] = outv.reshape(
                bt, (tq * HIDDEN) // 128, 128).astype(out_ref.dtype)
        else:
            out_ref[...] = outv.reshape(bt, tq, HIDDEN).astype(out_ref.dtype)
        # attn_dropout / proj_dropout have p=0.0 -> identity.

    return kernel


# ---------------------------------------------------------------------------
# Parameter preparation (hoist out of the per-forward path; prepare once).
# ---------------------------------------------------------------------------
def prepare_params(params):
    """PyTorch-convention params (W[out,in], b[out]) -> kernel layout:
    pre-transposed [in,out] bf16 weights, Q|V fused along the output axis,
    f32 biases."""
    wq, bq, wk, bk, wv, bv, wo, bo = params
    wqv = jnp.concatenate([wq.T, wv.T], axis=1).astype(jnp.bfloat16)   # (H, 2H)
    bqv = jnp.concatenate([jnp.ravel(bq), jnp.ravel(bv)]
                          ).reshape(1, -1).astype(jnp.float32)         # (1, 2H)
    return (wqv, bqv,
            wk.T.astype(jnp.bfloat16),
            jnp.ravel(bk).reshape(1, -1).astype(jnp.float32),
            wo.T.astype(jnp.bfloat16),
            jnp.ravel(bo).reshape(1, -1).astype(jnp.float32))


# ---------------------------------------------------------------------------
# Wrapper.
# ---------------------------------------------------------------------------
def attention1(hidden_states, qx, prepared_params, vis=True, block_q=None):
    """hidden_states, qx: [B, S, H] (f32 or bf16).  Returns (out, weights).

    `prepared_params` comes from prepare_params (prepare once, reuse).
    Attention weights (vis=True) are returned in bf16 to halve the
    O(B*NH*S^2) HBM writeback.
    """
    B, S, H = hidden_states.shape
    assert H == HIDDEN and qx.shape == (B, S, H)
    assert S % 8 == 0, "S must be a multiple of 8 (TPU sublane tiling)"

    wqv, bqv, wk_t, bk, wo_t, bo = prepared_params
    out_dtype = hidden_states.dtype
    probs_dtype = jnp.bfloat16
    in_itemsize = jnp.dtype(hidden_states.dtype).itemsize

    bt, tq = _choose_blocks(B, S, vis, in_itemsize, block_q)
    grid = (B // bt, S // tq)

    footprint = _vmem_footprint_bytes(bt, tq, S, vis, in_itemsize)
    cap = _vmem_capacity_bytes()
    vmem_limit = int(min(int(0.9 * cap),
                         max(32 * 1024 * 1024, int(footprint * 1.5))))

    seq_spec = pl.BlockSpec((bt, S, H), lambda b, q: (b, 0, 0))

    def const_spec(shape):
        return pl.BlockSpec(shape, lambda b, q, _n=len(shape): (0,) * _n)

    in_specs = [
        seq_spec,                       # hidden_states
        seq_spec,                       # qx
        const_spec((H, 2 * H)),         # fused Wq|Wv   [in, out]
        const_spec((1, 2 * H)),         # fused bq|bv
        const_spec((H, H)),             # Wk            [in, out]
        const_spec((1, H)),             # bk
        const_spec((H, H)),             # Wo            [in, out]
        const_spec((1, H)),             # bo
    ]

    scratch_shapes = [
        pltpu.VMEM((bt, S, H), jnp.bfloat16),        # Q (scale pre-folded)
        pltpu.VMEM((bt, 2 * S, H), jnp.bfloat16),    # K, head block-diagonal
        pltpu.VMEM((bt, 2 * S, H), jnp.bfloat16),    # V, head block-diagonal
    ]

    def run(lane_dense):
        if lane_dense:
            out_shapes = [jax.ShapeDtypeStruct((B, (S * H) // 128, 128),
                                               out_dtype)]
            out_specs = [pl.BlockSpec((bt, (tq * H) // 128, 128),
                                      lambda b, q: (b, q, 0))]
        else:
            out_shapes = [jax.ShapeDtypeStruct((B, S, H), out_dtype)]
            out_specs = [pl.BlockSpec((bt, tq, H), lambda b, q: (b, q, 0))]
        if vis:
            out_shapes.append(
                jax.ShapeDtypeStruct((B, NUM_HEADS, S, S), probs_dtype))
            out_specs.append(
                pl.BlockSpec((bt, NUM_HEADS, tq, S), lambda b, q: (b, 0, q, 0)))

        results = pl.pallas_call(
            _make_attention_kernel(vis, bt, tq, S, lane_dense),
            out_shape=tuple(out_shapes),
            grid_spec=pltpu.PrefetchScalarGridSpec(
                num_scalar_prefetch=0,
                grid=grid,
                in_specs=in_specs,
                out_specs=out_specs,
                scratch_shapes=scratch_shapes,
            ),
            compiler_params=pltpu.CompilerParams(
                dimension_semantics=("parallel", "arbitrary"),
                vmem_limit_bytes=vmem_limit),
        )(hidden_states, qx, wqv, bqv, wk_t, bk, wo_t, bo)

        out = results[0]
        if lane_dense:
            out = out.reshape(B, S, H)   # contiguous reshape outside the kernel
        return out, (results[1] if vis else None)

    lane_dense = (tq * H) % 128 == 0
    if lane_dense:
        try:
            return run(True)
        except Exception:
            # Fall back to the plain (B, S, H) output layout if the packed
            # lane-dense store layout is rejected by this Mosaic build.
            pass
    return run(False)


# ---------------------------------------------------------------------------
# Deterministic params + pure-JAX reference (mirrors the PyTorch forward).
# ---------------------------------------------------------------------------
def _init_params(key):
    ks = jax.random.split(key, 8)
    bound = 1.0 / math.sqrt(HIDDEN)

    def lin(kw, kb):
        w = jax.random.uniform(kw, (HIDDEN, HIDDEN), jnp.float32, -bound, bound)
        b = jax.random.uniform(kb, (1, HIDDEN), jnp.float32, -bound, bound)
        return w, b

    wq, bq = lin(ks[0], ks[1])
    wk, bk = lin(ks[2], ks[3])
    wv, bv = lin(ks[4], ks[5])
    wo, bo = lin(ks[6], ks[7])
    return (wq, bq, wk, bk, wv, bv, wo, bo)


def _reference(hidden_states, qx, params):
    wq, bq, wk, bk, wv, bv, wo, bo = params
    B, S, H = qx.shape

    def split_heads(x):  # (B,S,H) -> (B,NH,S,Dh)
        return x.reshape(B, S, NUM_HEADS, HEAD_DIM).transpose(0, 2, 1, 3)

    q = split_heads(qx @ wq.T + bq)
    k = split_heads(hidden_states @ wk.T + bk)
    v = split_heads(qx @ wv.T + bv)
    scores = jnp.einsum("bhqd,bhkd->bhqk", q, k) / math.sqrt(HEAD_DIM)
    probs = jax.nn.softmax(scores, axis=-1)
    ctx = jnp.einsum("bhqk,bhkd->bhqd", probs, v)
    ctx = ctx.transpose(0, 2, 1, 3).reshape(B, S, H)
    out = ctx @ wo.T + bo
    return out, probs


if __name__ == "__main__":
    key = jax.random.PRNGKey(0)
    k_hs, k_qx, k_params, k_hs2, k_qx2 = jax.random.split(key, 5)

    params = _init_params(k_params)
    prepared = prepare_params(params)   # hoisted: prepared once, reused below

    # --- small test (B=2, S=8), vis=True and vis=False ----------------------
    B, S = 2, 8
    hs = jax.random.normal(k_hs, (B, S, HIDDEN), jnp.float32)
    qx = jax.random.normal(k_qx, (B, S, HIDDEN), jnp.float32)
    ref_out, ref_w = _reference(hs, qx, params)

    out, w = attention1(hs, qx, prepared, vis=True)
    out = jax.block_until_ready(out)
    w = jax.block_until_ready(w)
    assert out.shape == (B, S, HIDDEN)
    assert w.shape == (B, NUM_HEADS, S, S)
    # bf16 MXU operands / bf16 probs / approx reciprocal -> loosened tolerances.
    assert jnp.allclose(out, ref_out, atol=2e-2, rtol=2e-2), \
        float(jnp.max(jnp.abs(out - ref_out)))
    assert jnp.allclose(w.astype(jnp.float32), ref_w, atol=1e-2, rtol=1e-2), \
        float(jnp.max(jnp.abs(w.astype(jnp.float32) - ref_w)))

    out2, w2 = attention1(hs, qx, prepared, vis=False)
    out2 = jax.block_until_ready(out2)
    assert w2 is None
    assert jnp.allclose(out2, ref_out, atol=2e-2, rtol=2e-2)

    # --- blocked-probs / multi-query-tile path (S=256, block_q=128) ---------
    B2, S2 = 2, 256
    hs2 = jax.random.normal(k_hs2, (B2, S2, HIDDEN), jnp.float32)
    qx2 = jax.random.normal(k_qx2, (B2, S2, HIDDEN), jnp.float32)
    ref_out2, ref_w2 = _reference(hs2, qx2, params)

    out3, w3 = attention1(hs2, qx2, prepared, vis=True, block_q=128)
    out3 = jax.block_until_ready(out3)
    w3 = jax.block_until_ready(w3)
    assert jnp.allclose(out3, ref_out2, atol=3e-2, rtol=3e-2), \
        float(jnp.max(jnp.abs(out3 - ref_out2)))
    assert jnp.allclose(w3.astype(jnp.float32), ref_w2, atol=1e-2, rtol=1e-2), \
        float(jnp.max(jnp.abs(w3.astype(jnp.float32) - ref_w2)))

    print("KERNEL_OK")
</pallas_src>

<mosaic_0001>
module attributes {stable_mosaic.version = 11 : i64} {
  func.func @kernel(%arg0: i32, %arg1: i32, %arg2: memref<2x8x64xf32, #tpu.memory_space<vmem>>, %arg3: memref<2x8x64xf32, #tpu.memory_space<vmem>>, %arg4: memref<64x128xbf16, #tpu.memory_space<vmem>>, %arg5: memref<1x128xf32, #tpu.memory_space<vmem>>, %arg6: memref<64x64xbf16, #tpu.memory_space<vmem>>, %arg7: memref<1x64xf32, #tpu.memory_space<vmem>>, %arg8: memref<64x64xbf16, #tpu.memory_space<vmem>>, %arg9: memref<1x64xf32, #tpu.memory_space<vmem>>, %arg10: memref<2x4x128xf32, #tpu.memory_space<vmem>>, %arg11: memref<2x2x8x8xbf16, #tpu.memory_space<vmem>>, %arg12: memref<2x8x64xbf16, #tpu.memory_space<vmem>>, %arg13: memref<2x16x64xbf16, #tpu.memory_space<vmem>>, %arg14: memref<2x16x64xbf16, #tpu.memory_space<vmem>>) attributes {dimension_semantics = [#tpu.dimension_semantics<parallel>, #tpu.dimension_semantics<arbitrary>], iteration_bounds = array<i64: 1, 1>, scalar_prefetch = 0 : i64, scratch_operands = 3 : i64, tpu.core_type = #tpu.core_type<tc>, window_params = [{transform_indices = @transform_0, window_bounds = array<i64: 2, 8, 64>}, {transform_indices = @transform_1, window_bounds = array<i64: 2, 8, 64>}, {pipeline_mode = #tpu.pipeline_mode<synchronous>, transform_indices = @transform_2, window_bounds = array<i64: 64, 128>}, {pipeline_mode = #tpu.pipeline_mode<synchronous>, transform_indices = @transform_3, window_bounds = array<i64: 1, 128>}, {pipeline_mode = #tpu.pipeline_mode<synchronous>, transform_indices = @transform_4, window_bounds = array<i64: 64, 64>}, {pipeline_mode = #tpu.pipeline_mode<synchronous>, transform_indices = @transform_5, window_bounds = array<i64: 1, 64>}, {pipeline_mode = #tpu.pipeline_mode<synchronous>, transform_indices = @transform_6, window_bounds = array<i64: 64, 64>}, {pipeline_mode = #tpu.pipeline_mode<synchronous>, transform_indices = @transform_7, window_bounds = array<i64: 1, 64>}, {transform_indices = @transform_8, window_bounds = array<i64: 2, 4, 128>}, {transform_indices = @transform_9, window_bounds = array<i64: 2, 2, 8, 8>}]} {
    %c0_i32 = arith.constant 0 : i32
    %0 = arith.cmpi eq, %arg1, %c0_i32 : i32
    %1 = arith.extui %0 : i1 to i32
    %c0_i32_0 = arith.constant 0 : i32
    %2 = arith.cmpi ne, %1, %c0_i32_0 : i32
    scf.if %2 {
      %c0_28 = arith.constant 0 : index
      %c0_29 = arith.constant 0 : index
      %c0_30 = arith.constant 0 : index
      %52 = vector.load %arg2[%c0_28, %c0_29, %c0_30] : memref<2x8x64xf32, #tpu.memory_space<vmem>>, vector<2x8x64xf32>
      %53 = vector.shape_cast %52 : vector<2x8x64xf32> to vector<16x64xf32>
      %54 = arith.truncf %53 : vector<16x64xf32> to vector<16x64xbf16>
      %c0_31 = arith.constant 0 : index
      %c0_32 = arith.constant 0 : index
      %c0_33 = arith.constant 0 : index
      %55 = vector.load %arg3[%c0_31, %c0_32, %c0_33] : memref<2x8x64xf32, #tpu.memory_space<vmem>>, vector<2x8x64xf32>
      %56 = vector.shape_cast %55 : vector<2x8x64xf32> to vector<16x64xf32>
      %57 = arith.truncf %56 : vector<16x64xf32> to vector<16x64xbf16>
      %c0_34 = arith.constant 0 : index
      %c0_35 = arith.constant 0 : index
      %58 = vector.load %arg4[%c0_34, %c0_35] : memref<64x128xbf16, #tpu.memory_space<vmem>>, vector<64x128xbf16>
      %cst_36 = arith.constant dense<0.000000e+00> : vector<16x128xf32>
      %59 = tpu.matmul %57, %58, %cst_36 {dimension_numbers = #tpu.dot_dimension_numbers<[1], [0], [0], [1], [0, 0, 1, 1], [], []>} : vector<16x64xbf16>, vector<64x128xbf16>, vector<16x128xf32> -> vector<16x128xf32>
      %c0_37 = arith.constant 0 : index
      %c0_38 = arith.constant 0 : index
      %60 = vector.load %arg5[%c0_37, %c0_38] : memref<1x128xf32, #tpu.memory_space<vmem>>, vector<1x128xf32>
      %61 = vector.broadcast %60 : vector<1x128xf32> to vector<16x128xf32>
      %62 = arith.addf %59, %61 : vector<16x128xf32>
      %c0_39 = arith.constant 0 : index
      %c0_40 = arith.constant 0 : index
      %63 = vector.load %arg6[%c0_39, %c0_40] : memref<64x64xbf16, #tpu.memory_space<vmem>>, vector<64x64xbf16>
      %cst_41 = arith.constant dense<0.000000e+00> : vector<16x64xf32>
      %64 = tpu.matmul %54, %63, %cst_41 {dimension_numbers = #tpu.dot_dimension_numbers<[1], [0], [0], [1], [0, 0, 1, 1], [], []>} : vector<16x64xbf16>, vector<64x64xbf16>, vector<16x64xf32> -> vector<16x64xf32>
      %c0_42 = arith.constant 0 : index
      %c0_43 = arith.constant 0 : index
      %65 = vector.load %arg7[%c0_42, %c0_43] : memref<1x64xf32, #tpu.memory_space<vmem>>, vector<1x64xf32>
      %66 = vector.broadcast %65 : vector<1x64xf32> to vector<16x64xf32>
      %67 = arith.addf %64, %66 : vector<16x64xf32>
      %68 = vector.extract_strided_slice %62 {offsets = [0, 0], sizes = [16, 64], strides = [1, 1]} : vector<16x128xf32> to vector<16x64xf32>
      %cst_44 = arith.constant 0.176776692 : f32
      %69 = vector.broadcast %cst_44 : f32 to vector<16x64xf32>
      %70 = arith.mulf %68, %69 : vector<16x64xf32>
      %71 = arith.truncf %70 : vector<16x64xf32> to vector<16x64xbf16>
      %72 = vector.shape_cast %71 : vector<16x64xbf16> to vector<2x8x64xbf16>
      %73 = vector.extract_strided_slice %62 {offsets = [0, 64], sizes = [16, 64], strides = [1, 1]} : vector<16x128xf32> to vector<16x64xf32>
      %74 = arith.truncf %73 : vector<16x64xf32> to vector<16x64xbf16>
      %75 = vector.shape_cast %74 : vector<16x64xbf16> to vector<2x8x64xbf16>
      %76 = arith.truncf %67 : vector<16x64xf32> to vector<16x64xbf16>
      %77 = vector.shape_cast %76 : vector<16x64xbf16> to vector<2x8x64xbf16>
      %78 = tpu.iota {dimensions = array<i32: 2>} : vector<1x1x64xi32>
      %c32_i32 = arith.constant 32 : i32
      %79 = vector.broadcast %c32_i32 : i32 to vector<1x1x64xi32>
      %80 = arith.cmpi slt, %78, %79 : vector<1x1x64xi32>
      %81 = arith.extui %80 : vector<1x1x64xi1> to vector<1x1x64xi32>
      %82 = arith.sitofp %81 : vector<1x1x64xi32> to vector<1x1x64xf32>
      %83 = arith.truncf %82 : vector<1x1x64xf32> to vector<1x1x64xbf16>
      %c32_i32_45 = arith.constant 32 : i32
      %84 = vector.broadcast %c32_i32_45 : i32 to vector<1x1x64xi32>
      %85 = arith.cmpi sge, %78, %84 : vector<1x1x64xi32>
      %86 = arith.extui %85 : vector<1x1x64xi1> to vector<1x1x64xi32>
      %87 = arith.sitofp %86 : vector<1x1x64xi32> to vector<1x1x64xf32>
      %88 = arith.truncf %87 : vector<1x1x64xf32> to vector<1x1x64xbf16>
      %c0_46 = arith.constant 0 : index
      %c0_47 = arith.constant 0 : index
      %c0_48 = arith.constant 0 : index
      %89 = vector.load %arg12[%c0_46, %c0_47, %c0_48] : memref<2x8x64xbf16, #tpu.memory_space<vmem>>, vector<2x8x64xbf16>
      tpu.vector_store %arg12[%c0_46, %c0_47, %c0_48], %72 {strides = array<i32>} : memref<2x8x64xbf16, #tpu.memory_space<vmem>>, vector<2x8x64xbf16>,
      %90 = vector.broadcast %83 : vector<1x1x64xbf16> to vector<2x8x64xbf16>
      %91 = arith.mulf %77, %90 : vector<2x8x64xbf16>
      %92 = vector.broadcast %88 : vector<1x1x64xbf16> to vector<2x8x64xbf16>
      %93 = arith.mulf %77, %92 : vector<2x8x64xbf16>
      %94 = tpu.concatenate %91, %93 in 1 : vector<2x8x64xbf16>, vector<2x8x64xbf16> -> vector<2x16x64xbf16>
      %c0_49 = arith.constant 0 : index
      %c0_50 = arith.constant 0 : index
      %c0_51 = arith.constant 0 : index
      %95 = vector.load %arg13[%c0_49, %c0_50, %c0_51] : memref<2x16x64xbf16, #tpu.memory_space<vmem>>, vector<2x16x64xbf16>
      tpu.vector_store %arg13[%c0_49, %c0_50, %c0_51], %94 {strides = array<i32>} : memref<2x16x64xbf16, #tpu.memory_space<vmem>>, vector<2x16x64xbf16>,
      %96 = vector.broadcast %83 : vector<1x1x64xbf16> to vector<2x8x64xbf16>
      %97 = arith.mulf %75, %96 : vector<2x8x64xbf16>
      %98 = vector.broadcast %88 : vector<1x1x64xbf16> to vector<2x8x64xbf16>
      %99 = arith.mulf %75, %98 : vector<2x8x64xbf16>
      %100 = tpu.concatenate %97, %99 in 1 : vector<2x8x64xbf16>, vector<2x8x64xbf16> -> vector<2x16x64xbf16>
      %c0_52 = arith.constant 0 : index
      %c0_53 = arith.constant 0 : index
      %c0_54 = arith.constant 0 : index
      %101 = vector.load %arg14[%c0_52, %c0_53, %c0_54] : memref<2x16x64xbf16, #tpu.memory_space<vmem>>, vector<2x16x64xbf16>
      tpu.vector_store %arg14[%c0_52, %c0_53, %c0_54], %100 {strides = array<i32>} : memref<2x16x64xbf16, #tpu.memory_space<vmem>>, vector<2x16x64xbf16>,
    } else {
    }
    %c8_i32 = arith.constant 8 : i32
    %3 = arith.muli %arg1, %c8_i32 : i32
    %4 = tpu.assume_multiple %3, 8 : i32
    %c0 = arith.constant 0 : index
    %5 = arith.index_cast %4 : i32 to index
    %c0_1 = arith.constant 0 : index
    %6 = vector.load %arg12[%c0, %5, %c0_1] : memref<2x8x64xbf16, #tpu.memory_space<vmem>>, vector<2x8x64xbf16>
    %c0_2 = arith.constant 0 : index
    %c0_3 = arith.constant 0 : index
    %c0_4 = arith.constant 0 : index
    %7 = vector.load %arg13[%c0_2, %c0_3, %c0_4] : memref<2x16x64xbf16, #tpu.memory_space<vmem>>, vector<2x16x64xbf16>
    "tpu.trace_start"() <{level = 10 : i32, message = "bqd,bkd->bqk"}> : () -> ()
    %cst = arith.constant dense<0.000000e+00> : vector<2x8x16xf32>
    %8 = tpu.matmul %6, %7, %cst {dimension_numbers = #tpu.dot_dimension_numbers<[2], [2], [1], [1], [0, 0, 0, 1, 1, 1], [0], [0]>} : vector<2x8x64xbf16>, vector<2x16x64xbf16>, vector<2x8x16xf32> -> vector<2x8x16xf32>
    "tpu.trace_stop"() : () -> ()
    %9 = vector.extract_strided_slice %8 {offsets = [0, 0, 0], sizes = [2, 8, 8], strides = [1, 1, 1]} : vector<2x8x16xf32> to vector<2x8x8xf32>
    %cst_5 = arith.constant dense<0xFF800000> : vector<2x8xf32>
    %10 = vector.multi_reduction <maximumf>, %9, %cst_5 [2] : vector<2x8x8xf32> to vector<2x8xf32>
    %11 = vector.shape_cast %10 : vector<2x8xf32> to vector<2x8x1xf32>
    %12 = vector.broadcast %11 : vector<2x8x1xf32> to vector<2x8x8xf32>
    %13 = arith.subf %9, %12 : vector<2x8x8xf32>
    %14 = math.exp %13 : vector<2x8x8xf32>
    %cst_6 = arith.constant dense<0.000000e+00> : vector<2x8xf32>
    %15 = vector.multi_reduction <add>, %14, %cst_6 [2] : vector<2x8x8xf32> to vector<2x8xf32>
    %16 = vector.shape_cast %15 : vector<2x8xf32> to vector<2x8x1xf32>
    %17 = tpu.reciprocal %16 {approx = true} : vector<2x8x1xf32> -> vector<2x8x1xf32>
    %18 = vector.broadcast %17 : vector<2x8x1xf32> to vector<2x8x8xf32>
    %19 = arith.mulf %14, %18 : vector<2x8x8xf32>
    %20 = vector.extract_strided_slice %8 {offsets = [0, 0, 8], sizes = [2, 8, 8], strides = [1, 1, 1]} : vector<2x8x16xf32> to vector<2x8x8xf32>
    %cst_7 = arith.constant dense<0xFF800000> : vector<2x8xf32>
    %21 = vector.multi_reduction <maximumf>, %20, %cst_7 [2] : vector<2x8x8xf32> to vector<2x8xf32>
    %22 = vector.shape_cast %21 : vector<2x8xf32> to vector<2x8x1xf32>
    %23 = vector.broadcast %22 : vector<2x8x1xf32> to vector<2x8x8xf32>
    %24 = arith.subf %20, %23 : vector<2x8x8xf32>
    %25 = math.exp %24 : vector<2x8x8xf32>
    %cst_8 = arith.constant dense<0.000000e+00> : vector<2x8xf32>
    %26 = vector.multi_reduction <add>, %25, %cst_8 [2] : vector<2x8x8xf32> to vector<2x8xf32>
    %27 = vector.shape_cast %26 : vector<2x8xf32> to vector<2x8x1xf32>
    %28 = tpu.reciprocal %27 {approx = true} : vector<2x8x1xf32> -> vector<2x8x1xf32>
    %29 = vector.broadcast %28 : vector<2x8x1xf32> to vector<2x8x8xf32>
    %30 = arith.mulf %25, %29 : vector<2x8x8xf32>
    %31 = arith.truncf %19 : vector<2x8x8xf32> to vector<2x8x8xbf16>
    %c0_9 = arith.constant 0 : index
    %c0_10 = arith.constant 0 : index
    %c0_11 = arith.constant 0 : index
    %c0_12 = arith.constant 0 : index
    %32 = vector.load %arg11[%c0_9, %c0_10, %c0_11, %c0_12] : memref<2x2x8x8xbf16, #tpu.memory_space<vmem>>, vector<2x1x8x8xbf16>
    %33 = vector.shape_cast %32 : vector<2x1x8x8xbf16> to vector<2x8x8xbf16>
    %34 = vector.shape_cast %31 : vector<2x8x8xbf16> to vector<2x1x8x8xbf16>
    tpu.vector_store %arg11[%c0_9, %c0_10, %c0_11, %c0_12], %34 {strides = array<i32>} : memref<2x2x8x8xbf16, #tpu.memory_space<vmem>>, vector<2x1x8x8xbf16>,
    %35 = arith.truncf %30 : vector<2x8x8xf32> to vector<2x8x8xbf16>
    %c0_13 = arith.constant 0 : index
    %c1 = arith.constant 1 : index
    %c0_14 = arith.constant 0 : index
    %c0_15 = arith.constant 0 : index
    %36 = vector.load %arg11[%c0_13, %c1, %c0_14, %c0_15] : memref<2x2x8x8xbf16, #tpu.memory_space<vmem>>, vector<2x1x8x8xbf16>
    %37 = vector.shape_cast %36 : vector<2x1x8x8xbf16> to vector<2x8x8xbf16>
    %38 = vector.shape_cast %35 : vector<2x8x8xbf16> to vector<2x1x8x8xbf16>
    tpu.vector_store %arg11[%c0_13, %c1, %c0_14, %c0_15], %38 {strides = array<i32>} : memref<2x2x8x8xbf16, #tpu.memory_space<vmem>>, vector<2x1x8x8xbf16>,
    %39 = tpu.concatenate %19, %30 in 2 : vector<2x8x8xf32>, vector<2x8x8xf32> -> vector<2x8x16xf32>
    %40 = arith.truncf %39 : vector<2x8x16xf32> to vector<2x8x16xbf16>
    %c0_16 = arith.constant 0 : index
    %c0_17 = arith.constant 0 : index
    %c0_18 = arith.constant 0 : index
    %41 = vector.load %arg14[%c0_16, %c0_17, %c0_18] : memref<2x16x64xbf16, #tpu.memory_space<vmem>>, vector<2x16x64xbf16>
    "tpu.trace_start"() <{level = 10 : i32, message = "bqk,bkd->bqd"}> : () -> ()
    %cst_19 = arith.constant dense<0.000000e+00> : vector<2x8x64xf32>
    %42 = tpu.matmul %40, %41, %cst_19 {dimension_numbers = #tpu.dot_dimension_numbers<[2], [1], [1], [2], [0, 0, 0, 1, 1, 2], [0], [0]>} : vector<2x8x16xbf16>, vector<2x16x64xbf16>, vector<2x8x64xf32> -> vector<2x8x64xf32>
    "tpu.trace_stop"() : () -> ()
    %43 = vector.shape_cast %42 : vector<2x8x64xf32> to vector<16x64xf32>
    %44 = arith.truncf %43 : vector<16x64xf32> to vector<16x64xbf16>
    %c0_20 = arith.constant 0 : index
    %c0_21 = arith.constant 0 : index
    %45 = vector.load %arg8[%c0_20, %c0_21] : memref<64x64xbf16, #tpu.memory_space<vmem>>, vector<64x64xbf16>
    %cst_22 = arith.constant dense<0.000000e+00> : vector<16x64xf32>
    %46 = tpu.matmul %44, %45, %cst_22 {dimension_numbers = #tpu.dot_dimension_numbers<[1], [0], [0], [1], [0, 0, 1, 1], [], []>} : vector<16x64xbf16>, vector<64x64xbf16>, vector<16x64xf32> -> vector<16x64xf32>
    %c0_23 = arith.constant 0 : index
    %c0_24 = arith.constant 0 : index
    %47 = vector.load %arg9[%c0_23, %c0_24] : memref<1x64xf32, #tpu.memory_space<vmem>>, vector<1x64xf32>
    %48 = vector.broadcast %47 : vector<1x64xf32> to vector<16x64xf32>
    %49 = arith.addf %46, %48 : vector<16x64xf32>
    %50 = vector.shape_cast %49 : vector<16x64xf32> to vector<2x4x128xf32>
    %c0_25 = arith.constant 0 : index
    %c0_26 = arith.constant 0 : index
    %c0_27 = arith.constant 0 : index
    %51 = vector.load %arg10[%c0_25, %c0_26, %c0_27] : memref<2x4x128xf32, #tpu.memory_space<vmem>>, vector<2x4x128xf32>
    tpu.vector_store %arg10[%c0_25, %c0_26, %c0_27], %50 {strides = array<i32>} : memref<2x4x128xf32, #tpu.memory_space<vmem>>, vector<2x4x128xf32>,
    return
  }
  func.func @transform_0(%arg0: i32, %arg1: i32) -> (i32, i32, i32) {
    %c0_i32 = arith.constant 0 : i32
    %c0_i32_0 = arith.constant 0 : i32
    %c0_i32_1 = arith.constant 0 : i32
    return %arg0, %c0_i32, %c0_i32_0 : i32, i32, i32
  }
  func.func @transform_1(%arg0: i32, %arg1: i32) -> (i32, i32, i32) {
    %c0_i32 = arith.constant 0 : i32
    %c0_i32_0 = arith.constant 0 : i32
    %c0_i32_1 = arith.constant 0 : i32
    return %arg0, %c0_i32, %c0_i32_0 : i32, i32, i32
  }
  func.func @transform_2(%arg0: i32, %arg1: i32) -> (i32, i32) {
    %c0_i32 = arith.constant 0 : i32
    %c0_i32_0 = arith.constant 0 : i32
    %c0_i32_1 = arith.constant 0 : i32
    return %c0_i32, %c0_i32_0 : i32, i32
  }
  func.func @transform_3(%arg0: i32, %arg1: i32) -> (i32, i32) {
    %c0_i32 = arith.constant 0 : i32
    %c0_i32_0 = arith.constant 0 : i32
    %c0_i32_1 = arith.constant 0 : i32
    return %c0_i32, %c0_i32_0 : i32, i32
  }
  func.func @transform_4(%arg0: i32, %arg1: i32) -> (i32, i32) {
    %c0_i32 = arith.constant 0 : i32
    %c0_i32_0 = arith.constant 0 : i32
    %c0_i32_1 = arith.constant 0 : i32
    return %c0_i32, %c0_i32_0 : i32, i32
  }
  func.func @transform_5(%arg0: i32, %arg1: i32) -> (i32, i32) {
    %c0_i32 = arith.constant 0 : i32
    %c0_i32_0 = arith.constant 0 : i32
    %c0_i32_1 = arith.constant 0 : i32
    return %c0_i32, %c0_i32_0 : i32, i32
  }
  func.func @transform_6(%arg0: i32, %arg1: i32) -> (i32, i32) {
    %c0_i32 = arith.constant 0 : i32
    %c0_i32_0 = arith.constant 0 : i32
    %c0_i32_1 = arith.constant 0 : i32
    return %c0_i32, %c0_i32_0 : i32, i32
  }
  func.func @transform_7(%arg0: i32, %arg1: i32) -> (i32, i32) {
    %c0_i32 = arith.constant 0 : i32
    %c0_i32_0 = arith.constant 0 : i32
    %c0_i32_1 = arith.constant 0 : i32
    return %c0_i32, %c0_i32_0 : i32, i32
  }
  func.func @transform_8(%arg0: i32, %arg1: i32) -> (i32, i32, i32) {
    %c0_i32 = arith.constant 0 : i32
    %c0_i32_0 = arith.constant 0 : i32
    return %arg0, %arg1, %c0_i32 : i32, i32, i32
  }
  func.func @transform_9(%arg0: i32, %arg1: i32) -> (i32, i32, i32, i32) {
    %c0_i32 = arith.constant 0 : i32
    %c0_i32_0 = arith.constant 0 : i32
    %c0_i32_1 = arith.constant 0 : i32
    return %arg0, %c0_i32, %arg1, %c0_i32_0 : i32, i32, i32, i32
  }
}

module attributes {stable_mosaic.version = 11 : i64} {
  func.func @kernel(%arg0: i32, %arg1: i32, %arg2: memref<2x8x64xf32, #tpu.memory_space<vmem>>, %arg3: memref<2x8x64xf32, #tpu.memory_space<vmem>>, %arg4: memref<64x128xbf16, #tpu.memory_space<vmem>>, %arg5: memref<1x128xf32, #tpu.memory_space<vmem>>, %arg6: memref<64x64xbf16, #tpu.memory_space<vmem>>, %arg7: memref<1x64xf32, #tpu.memory_space<vmem>>, %arg8: memref<64x64xbf16, #tpu.memory_space<vmem>>, %arg9: memref<1x64xf32, #tpu.memory_space<vmem>>, %arg10: memref<2x8x64xf32, #tpu.memory_space<vmem>>, %arg11: memref<2x2x8x8xbf16, #tpu.memory_space<vmem>>, %arg12: memref<2x8x64xbf16, #tpu.memory_space<vmem>>, %arg13: memref<2x16x64xbf16, #tpu.memory_space<vmem>>, %arg14: memref<2x16x64xbf16, #tpu.memory_space<vmem>>) attributes {dimension_semantics = [#tpu.dimension_semantics<parallel>, #tpu.dimension_semantics<arbitrary>], iteration_bounds = array<i64: 1, 1>, scalar_prefetch = 0 : i64, scratch_operands = 3 : i64, tpu.core_type = #tpu.core_type<tc>, window_params = [{transform_indices = @transform_0, window_bounds = array<i64: 2, 8, 64>}, {transform_indices = @transform_1, window_bounds = array<i64: 2, 8, 64>}, {pipeline_mode = #tpu.pipeline_mode<synchronous>, transform_indices = @transform_2, window_bounds = array<i64: 64, 128>}, {pipeline_mode = #tpu.pipeline_mode<synchronous>, transform_indices = @transform_3, window_bounds = array<i64: 1, 128>}, {pipeline_mode = #tpu.pipeline_mode<synchronous>, transform_indices = @transform_4, window_bounds = array<i64: 64, 64>}, {pipeline_mode = #tpu.pipeline_mode<synchronous>, transform_indices = @transform_5, window_bounds = array<i64: 1, 64>}, {pipeline_mode = #tpu.pipeline_mode<synchronous>, transform_indices = @transform_6, window_bounds = array<i64: 64, 64>}, {pipeline_mode = #tpu.pipeline_mode<synchronous>, transform_indices = @transform_7, window_bounds = array<i64: 1, 64>}, {transform_indices = @transform_8, window_bounds = array<i64: 2, 8, 64>}, {transform_indices = @transform_9, window_bounds = array<i64: 2, 2, 8, 8>}]} {
    %c0_i32 = arith.constant 0 : i32
    %0 = arith.cmpi eq, %arg1, %c0_i32 : i32
    %1 = arith.extui %0 : i1 to i32
    %c0_i32_0 = arith.constant 0 : i32
    %2 = arith.cmpi ne, %1, %c0_i32_0 : i32
    scf.if %2 {
      %c0_28 = arith.constant 0 : index
      %c0_29 = arith.constant 0 : index
      %c0_30 = arith.constant 0 : index
      %52 = vector.load %arg2[%c0_28, %c0_29, %c0_30] : memref<2x8x64xf32, #tpu.memory_space<vmem>>, vector<2x8x64xf32>
      %53 = vector.shape_cast %52 : vector<2x8x64xf32> to vector<16x64xf32>
      %54 = arith.truncf %53 : vector<16x64xf32> to vector<16x64xbf16>
      %c0_31 = arith.constant 0 : index
      %c0_32 = arith.constant 0 : index
      %c0_33 = arith.constant 0 : index
      %55 = vector.load %arg3[%c0_31, %c0_32, %c0_33] : memref<2x8x64xf32, #tpu.memory_space<vmem>>, vector<2x8x64xf32>
      %56 = vector.shape_cast %55 : vector<2x8x64xf32> to vector<16x64xf32>
      %57 = arith.truncf %56 : vector<16x64xf32> to vector<16x64xbf16>
      %c0_34 = arith.constant 0 : index
      %c0_35 = arith.constant 0 : index
      %58 = vector.load %arg4[%c0_34, %c0_35] : memref<64x128xbf16, #tpu.memory_space<vmem>>, vector<64x128xbf16>
      %cst_36 = arith.constant dense<0.000000e+00> : vector<16x128xf32>
      %59 = tpu.matmul %57, %58, %cst_36 {dimension_numbers = #tpu.dot_dimension_numbers<[1], [0], [0], [1], [0, 0, 1, 1], [], []>} : vector<16x64xbf16>, vector<64x128xbf16>, vector<16x128xf32> -> vector<16x128xf32>
      %c0_37 = arith.constant 0 : index
      %c0_38 = arith.constant 0 : index
      %60 = vector.load %arg5[%c0_37, %c0_38] : memref<1x128xf32, #tpu.memory_space<vmem>>, vector<1x128xf32>
      %61 = vector.broadcast %60 : vector<1x128xf32> to vector<16x128xf32>
      %62 = arith.addf %59, %61 : vector<16x128xf32>
      %c0_39 = arith.constant 0 : index
      %c0_40 = arith.constant 0 : index
      %63 = vector.load %arg6[%c0_39, %c0_40] : memref<64x64xbf16, #tpu.memory_space<vmem>>, vector<64x64xbf16>
      %cst_41 = arith.constant dense<0.000000e+00> : vector<16x64xf32>
      %64 = tpu.matmul %54, %63, %cst_41 {dimension_numbers = #tpu.dot_dimension_numbers<[1], [0], [0], [1], [0, 0, 1, 1], [], []>} : vector<16x64xbf16>, vector<64x64xbf16>, vector<16x64xf32> -> vector<16x64xf32>
      %c0_42 = arith.constant 0 : index
      %c0_43 = arith.constant 0 : index
      %65 = vector.load %arg7[%c0_42, %c0_43] : memref<1x64xf32, #tpu.memory_space<vmem>>, vector<1x64xf32>
      %66 = vector.broadcast %65 : vector<1x64xf32> to vector<16x64xf32>
      %67 = arith.addf %64, %66 : vector<16x64xf32>
      %68 = vector.extract_strided_slice %62 {offsets = [0, 0], sizes = [16, 64], strides = [1, 1]} : vector<16x128xf32> to vector<16x64xf32>
      %cst_44 = arith.constant 0.176776692 : f32
      %69 = vector.broadcast %cst_44 : f32 to vector<16x64xf32>
      %70 = arith.mulf %68, %69 : vector<16x64xf32>
      %71 = arith.truncf %70 : vector<16x64xf32> to vector<16x64xbf16>
      %72 = vector.shape_cast %71 : vector<16x64xbf16> to vector<2x8x64xbf16>
      %73 = vector.extract_strided_slice %62 {offsets = [0, 64], sizes = [16, 64], strides = [1, 1]} : vector<16x128xf32> to vector<16x64xf32>
      %74 = arith.truncf %73 : vector<16x64xf32> to vector<16x64xbf16>
      %75 = vector.shape_cast %74 : vector<16x64xbf16> to vector<2x8x64xbf16>
      %76 = arith.truncf %67 : vector<16x64xf32> to vector<16x64xbf16>
      %77 = vector.shape_cast %76 : vector<16x64xbf16> to vector<2x8x64xbf16>
      %78 = tpu.iota {dimensions = array<i32: 2>} : vector<1x1x64xi32>
      %c32_i32 = arith.constant 32 : i32
      %79 = vector.broadcast %c32_i32 : i32 to vector<1x1x64xi32>
      %80 = arith.cmpi slt, %78, %79 : vector<1x1x64xi32>
      %81 = arith.extui %80 : vector<1x1x64xi1> to vector<1x1x64xi32>
      %82 = arith.sitofp %81 : vector<1x1x64xi32> to vector<1x1x64xf32>
      %83 = arith.truncf %82 : vector<1x1x64xf32> to vector<1x1x64xbf16>
      %c32_i32_45 = arith.constant 32 : i32
      %84 = vector.broadcast %c32_i32_45 : i32 to vector<1x1x64xi32>
      %85 = arith.cmpi sge, %78, %84 : vector<1x1x64xi32>
      %86 = arith.extui %85 : vector<1x1x64xi1> to vector<1x1x64xi32>
      %87 = arith.sitofp %86 : vector<1x1x64xi32> to vector<1x1x64xf32>
      %88 = arith.truncf %87 : vector<1x1x64xf32> to vector<1x1x64xbf16>
      %c0_46 = arith.constant 0 : index
      %c0_47 = arith.constant 0 : index
      %c0_48 = arith.constant 0 : index
      %89 = vector.load %arg12[%c0_46, %c0_47, %c0_48] : memref<2x8x64xbf16, #tpu.memory_space<vmem>>, vector<2x8x64xbf16>
      tpu.vector_store %arg12[%c0_46, %c0_47, %c0_48], %72 {strides = array<i32>} : memref<2x8x64xbf16, #tpu.memory_space<vmem>>, vector<2x8x64xbf16>,
      %90 = vector.broadcast %83 : vector<1x1x64xbf16> to vector<2x8x64xbf16>
      %91 = arith.mulf %77, %90 : vector<2x8x64xbf16>
      %92 = vector.broadcast %88 : vector<1x1x64xbf16> to vector<2x8x64xbf16>
      %93 = arith.mulf %77, %92 : vector<2x8x64xbf16>
      %94 = tpu.concatenate %91, %93 in 1 : vector<2x8x64xbf16>, vector<2x8x64xbf16> -> vector<2x16x64xbf16>
      %c0_49 = arith.constant 0 : index
      %c0_50 = arith.constant 0 : index
      %c0_51 = arith.constant 0 : index
      %95 = vector.load %arg13[%c0_49, %c0_50, %c0_51] : memref<2x16x64xbf16, #tpu.memory_space<vmem>>, vector<2x16x64xbf16>
      tpu.vector_store %arg13[%c0_49, %c0_50, %c0_51], %94 {strides = array<i32>} : memref<2x16x64xbf16, #tpu.memory_space<vmem>>, vector<2x16x64xbf16>,
      %96 = vector.broadcast %83 : vector<1x1x64xbf16> to vector<2x8x64xbf16>
      %97 = arith.mulf %75, %96 : vector<2x8x64xbf16>
      %98 = vector.broadcast %88 : vector<1x1x64xbf16> to vector<2x8x64xbf16>
      %99 = arith.mulf %75, %98 : vector<2x8x64xbf16>
      %100 = tpu.concatenate %97, %99 in 1 : vector<2x8x64xbf16>, vector<2x8x64xbf16> -> vector<2x16x64xbf16>
      %c0_52 = arith.constant 0 : index
      %c0_53 = arith.constant 0 : index
      %c0_54 = arith.constant 0 : index
      %101 = vector.load %arg14[%c0_52, %c0_53, %c0_54] : memref<2x16x64xbf16, #tpu.memory_space<vmem>>, vector<2x16x64xbf16>
      tpu.vector_store %arg14[%c0_52, %c0_53, %c0_54], %100 {strides = array<i32>} : memref<2x16x64xbf16, #tpu.memory_space<vmem>>, vector<2x16x64xbf16>,
    } else {
    }
    %c8_i32 = arith.constant 8 : i32
    %3 = arith.muli %arg1, %c8_i32 : i32
    %4 = tpu.assume_multiple %3, 8 : i32
    %c0 = arith.constant 0 : index
    %5 = arith.index_cast %4 : i32 to index
    %c0_1 = arith.constant 0 : index
    %6 = vector.load %arg12[%c0, %5, %c0_1] : memref<2x8x64xbf16, #tpu.memory_space<vmem>>, vector<2x8x64xbf16>
    %c0_2 = arith.constant 0 : index
    %c0_3 = arith.constant 0 : index
    %c0_4 = arith.constant 0 : index
    %7 = vector.load %arg13[%c0_2, %c0_3, %c0_4] : memref<2x16x64xbf16, #tpu.memory_space<vmem>>, vector<2x16x64xbf16>
    "tpu.trace_start"() <{level = 10 : i32, message = "bqd,bkd->bqk"}> : () -> ()
    %cst = arith.constant dense<0.000000e+00> : vector<2x8x16xf32>
    %8 = tpu.matmul %6, %7, %cst {dimension_numbers = #tpu.dot_dimension_numbers<[2], [2], [1], [1], [0, 0, 0, 1, 1, 1], [0], [0]>} : vector<2x8x64xbf16>, vector<2x16x64xbf16>, vector<2x8x16xf32> -> vector<2x8x16xf32>
    "tpu.trace_stop"() : () -> ()
    %9 = vector.extract_strided_slice %8 {offsets = [0, 0, 0], sizes = [2, 8, 8], strides = [1, 1, 1]} : vector<2x8x16xf32> to vector<2x8x8xf32>
    %cst_5 = arith.constant dense<0xFF800000> : vector<2x8xf32>
    %10 = vector.multi_reduction <maximumf>, %9, %cst_5 [2] : vector<2x8x8xf32> to vector<2x8xf32>
    %11 = vector.shape_cast %10 : vector<2x8xf32> to vector<2x8x1xf32>
    %12 = vector.broadcast %11 : vector<2x8x1xf32> to vector<2x8x8xf32>
    %13 = arith.subf %9, %12 : vector<2x8x8xf32>
    %14 = math.exp %13 : vector<2x8x8xf32>
    %cst_6 = arith.constant dense<0.000000e+00> : vector<2x8xf32>
    %15 = vector.multi_reduction <add>, %14, %cst_6 [2] : vector<2x8x8xf32> to vector<2x8xf32>
    %16 = vector.shape_cast %15 : vector<2x8xf32> to vector<2x8x1xf32>
    %17 = tpu.reciprocal %16 {approx = true} : vector<2x8x1xf32> -> vector<2x8x1xf32>
    %18 = vector.broadcast %17 : vector<2x8x1xf32> to vector<2x8x8xf32>
    %19 = arith.mulf %14, %18 : vector<2x8x8xf32>
    %20 = vector.extract_strided_slice %8 {offsets = [0, 0, 8], sizes = [2, 8, 8], strides = [1, 1, 1]} : vector<2x8x16xf32> to vector<2x8x8xf32>
    %cst_7 = arith.constant dense<0xFF800000> : vector<2x8xf32>
    %21 = vector.multi_reduction <maximumf>, %20, %cst_7 [2] : vector<2x8x8xf32> to vector<2x8xf32>
    %22 = vector.shape_cast %21 : vector<2x8xf32> to vector<2x8x1xf32>
    %23 = vector.broadcast %22 : vector<2x8x1xf32> to vector<2x8x8xf32>
    %24 = arith.subf %20, %23 : vector<2x8x8xf32>
    %25 = math.exp %24 : vector<2x8x8xf32>
    %cst_8 = arith.constant dense<0.000000e+00> : vector<2x8xf32>
    %26 = vector.multi_reduction <add>, %25, %cst_8 [2] : vector<2x8x8xf32> to vector<2x8xf32>
    %27 = vector.shape_cast %26 : vector<2x8xf32> to vector<2x8x1xf32>
    %28 = tpu.reciprocal %27 {approx = true} : vector<2x8x1xf32> -> vector<2x8x1xf32>
    %29 = vector.broadcast %28 : vector<2x8x1xf32> to vector<2x8x8xf32>
    %30 = arith.mulf %25, %29 : vector<2x8x8xf32>
    %31 = arith.truncf %19 : vector<2x8x8xf32> to vector<2x8x8xbf16>
    %c0_9 = arith.constant 0 : index
    %c0_10 = arith.constant 0 : index
    %c0_11 = arith.constant 0 : index
    %c0_12 = arith.constant 0 : index
    %32 = vector.load %arg11[%c0_9, %c0_10, %c0_11, %c0_12] : memref<2x2x8x8xbf16, #tpu.memory_space<vmem>>, vector<2x1x8x8xbf16>
    %33 = vector.shape_cast %32 : vector<2x1x8x8xbf16> to vector<2x8x8xbf16>
    %34 = vector.shape_cast %31 : vector<2x8x8xbf16> to vector<2x1x8x8xbf16>
    tpu.vector_store %arg11[%c0_9, %c0_10, %c0_11, %c0_12], %34 {strides = array<i32>} : memref<2x2x8x8xbf16, #tpu.memory_space<vmem>>, vector<2x1x8x8xbf16>,
    %35 = arith.truncf %30 : vector<2x8x8xf32> to vector<2x8x8xbf16>
    %c0_13 = arith.constant 0 : index
    %c1 = arith.constant 1 : index
    %c0_14 = arith.constant 0 : index
    %c0_15 = arith.constant 0 : index
    %36 = vector.load %arg11[%c0_13, %c1, %c0_14, %c0_15] : memref<2x2x8x8xbf16, #tpu.memory_space<vmem>>, vector<2x1x8x8xbf16>
    %37 = vector.shape_cast %36 : vector<2x1x8x8xbf16> to vector<2x8x8xbf16>
    %38 = vector.shape_cast %35 : vector<2x8x8xbf16> to vector<2x1x8x8xbf16>
    tpu.vector_store %arg11[%c0_13, %c1, %c0_14, %c0_15], %38 {strides = array<i32>} : memref<2x2x8x8xbf16, #tpu.memory_space<vmem>>, vector<2x1x8x8xbf16>,
    %39 = tpu.concatenate %19, %30 in 2 : vector<2x8x8xf32>, vector<2x8x8xf32> -> vector<2x8x16xf32>
    %40 = arith.truncf %39 : vector<2x8x16xf32> to vector<2x8x16xbf16>
    %c0_16 = arith.constant 0 : index
    %c0_17 = arith.constant 0 : index
    %c0_18 = arith.constant 0 : index
    %41 = vector.load %arg14[%c0_16, %c0_17, %c0_18] : memref<2x16x64xbf16, #tpu.memory_space<vmem>>, vector<2x16x64xbf16>
    "tpu.trace_start"() <{level = 10 : i32, message = "bqk,bkd->bqd"}> : () -> ()
    %cst_19 = arith.constant dense<0.000000e+00> : vector<2x8x64xf32>
    %42 = tpu.matmul %40, %41, %cst_19 {dimension_numbers = #tpu.dot_dimension_numbers<[2], [1], [1], [2], [0, 0, 0, 1, 1, 2], [0], [0]>} : vector<2x8x16xbf16>, vector<2x16x64xbf16>, vector<2x8x64xf32> -> vector<2x8x64xf32>
    "tpu.trace_stop"() : () -> ()
    %43 = vector.shape_cast %42 : vector<2x8x64xf32> to vector<16x64xf32>
    %44 = arith.truncf %43 : vector<16x64xf32> to vector<16x64xbf16>
    %c0_20 = arith.constant 0 : index
    %c0_21 = arith.constant 0 : index
    %45 = vector.load %arg8[%c0_20, %c0_21] : memref<64x64xbf16, #tpu.memory_space<vmem>>, vector<64x64xbf16>
    %cst_22 = arith.constant dense<0.000000e+00> : vector<16x64xf32>
    %46 = tpu.matmul %44, %45, %cst_22 {dimension_numbers = #tpu.dot_dimension_numbers<[1], [0], [0], [1], [0, 0, 1, 1], [], []>} : vector<16x64xbf16>, vector<64x64xbf16>, vector<16x64xf32> -> vector<16x64xf32>
    %c0_23 = arith.constant 0 : index
    %c0_24 = arith.constant 0 : index
    %47 = vector.load %arg9[%c0_23, %c0_24] : memref<1x64xf32, #tpu.memory_space<vmem>>, vector<1x64xf32>
    %48 = vector.broadcast %47 : vector<1x64xf32> to vector<16x64xf32>
    %49 = arith.addf %46, %48 : vector<16x64xf32>
    %50 = vector.shape_cast %49 : vector<16x64xf32> to vector<2x8x64xf32>
    %c0_25 = arith.constant 0 : index
    %c0_26 = arith.constant 0 : index
    %c0_27 = arith.constant 0 : index
    %51 = vector.load %arg10[%c0_25, %c0_26, %c0_27] : memref<2x8x64xf32, #tpu.memory_space<vmem>>, vector<2x8x64xf32>
    tpu.vector_store %arg10[%c0_25, %c0_26, %c0_27], %50 {strides = array<i32>} : memref<2x8x64xf32, #tpu.memory_space<vmem>>, vector<2x8x64xf32>,
    return
  }
  func.func @transform_0(%arg0: i32, %arg1: i32) -> (i32, i32, i32) {
    %c0_i32 = arith.constant 0 : i32
    %c0_i32_0 = arith.constant 0 : i32
    %c0_i32_1 = arith.constant 0 : i32
    return %arg0, %c0_i32, %c0_i32_0 : i32, i32, i32
  }
  func.func @transform_1(%arg0: i32, %arg1: i32) -> (i32, i32, i32) {
    %c0_i32 = arith.constant 0 : i32
    %c0_i32_0 = arith.constant 0 : i32
    %c0_i32_1 = arith.constant 0 : i32
    return %arg0, %c0_i32, %c0_i32_0 : i32, i32, i32
  }
  func.func @transform_2(%arg0: i32, %arg1: i32) -> (i32, i32) {
    %c0_i32 = arith.constant 0 : i32
    %c0_i32_0 = arith.constant 0 : i32
    %c0_i32_1 = arith.constant 0 : i32
    return %c0_i32, %c0_i32_0 : i32, i32
  }
  func.func @transform_3(%arg0: i32, %arg1: i32) -> (i32, i32) {
    %c0_i32 = arith.constant 0 : i32
    %c0_i32_0 = arith.constant 0 : i32
    %c0_i32_1 = arith.constant 0 : i32
    return %c0_i32, %c0_i32_0 : i32, i32
  }
  func.func @transform_4(%arg0: i32, %arg1: i32) -> (i32, i32) {
    %c0_i32 = arith.constant 0 : i32
    %c0_i32_0 = arith.constant 0 : i32
    %c0_i32_1 = arith.constant 0 : i32
    return %c0_i32, %c0_i32_0 : i32, i32
  }
  func.func @transform_5(%arg0: i32, %arg1: i32) -> (i32, i32) {
    %c0_i32 = arith.constant 0 : i32
    %c0_i32_0 = arith.constant 0 : i32
    %c0_i32_1 = arith.constant 0 : i32
    return %c0_i32, %c0_i32_0 : i32, i32
  }
  func.func @transform_6(%arg0: i32, %arg1: i32) -> (i32, i32) {
    %c0_i32 = arith.constant 0 : i32
    %c0_i32_0 = arith.constant 0 : i32
    %c0_i32_1 = arith.constant 0 : i32
    return %c0_i32, %c0_i32_0 : i32, i32
  }
  func.func @transform_7(%arg0: i32, %arg1: i32) -> (i32, i32) {
    %c0_i32 = arith.constant 0 : i32
    %c0_i32_0 = arith.constant 0 : i32
    %c0_i32_1 = arith.constant 0 : i32
    return %c0_i32, %c0_i32_0 : i32, i32
  }
  func.func @transform_8(%arg0: i32, %arg1: i32) -> (i32, i32, i32) {
    %c0_i32 = arith.constant 0 : i32
    %c0_i32_0 = arith.constant 0 : i32
    return %arg0, %arg1, %c0_i32 : i32, i32, i32
  }
  func.func @transform_9(%arg0: i32, %arg1: i32) -> (i32, i32, i32, i32) {
    %c0_i32 = arith.constant 0 : i32
    %c0_i32_0 = arith.constant 0 : i32
    %c0_i32_1 = arith.constant 0 : i32
    return %arg0, %c0_i32, %arg1, %c0_i32_0 : i32, i32, i32, i32
  }
}

</mosaic_0001>

<llo_original>
// kernel: tpu_custom_call.1
$region0: #{tpu_custom_call.1}
  #allocation0 [shape = 'u32[]', space=smem, size = 0x4, offset = 0x4, fixed_abs, tag = 'smem constant byte address 0x4 - core index']
  #allocation1 [shape = 'u32[144,128]{1,0:T(1,128)}', space=vmem, size = 0x12000, scoped, tag = 'internal scratch']
  #allocation2 [shape = 'bf16[2,8,64]{2,1,0:T(8,128)(2,1)}', space=vmem, size = 0x1000, scoped, tag = 'scratch operand']
  #allocation3 [shape = 'bf16[2,16,64]{2,1,0:T(16,128)(2,1)}', space=vmem, size = 0x2000, scoped, tag = 'scratch operand']
  #allocation4 [shape = 'bf16[2,16,64]{2,1,0:T(16,128)(2,1)}', space=vmem, size = 0x2000, scoped, tag = 'scratch operand']
  %s0 = inlined_call_operand.hbm [shape: f32[2,8,64], index: 0, kind: input, shape index: {}]
  %s1 = inlined_call_operand.hbm [shape: f32[2,8,64], index: 1, kind: input, shape index: {}]
  %s2 = inlined_call_operand.hbm [shape: bf16[64,128], index: 2, kind: input, shape index: {}]
  %s3 = inlined_call_operand.vmem [shape: f32[1,128], index: 3, kind: input, shape index: {}]
  %s4 = inlined_call_operand.hbm [shape: bf16[64,64], index: 4, kind: input, shape index: {}]
  %s5 = inlined_call_operand.vmem [shape: f32[1,64], index: 5, kind: input, shape index: {}]
  %s6 = inlined_call_operand.hbm [shape: bf16[64,64], index: 6, kind: input, shape index: {}]
  %s7 = inlined_call_operand.vmem [shape: f32[1,64], index: 7, kind: input, shape index: {}]
  %s8 = inlined_call_operand.hbm [shape: f32[2,8,64], index: 8, kind: output, shape index: {0}]
  %s9 = inlined_call_operand.hbm [shape: bf16[2,2,8,8], index: 9, kind: output, shape index: {1}]
  %10 = xla_tuple %s8, %s9
  %s11 = sld [smem:[#allocation0]]
  $region74: #{tpu_custom_call.1} parent=0
    _
  %s13 = ssub.s32 1, %s11
  %s14 = scalar_select 0, %s13, %s11
  $region1: #{tpu_custom_call.1} parent=0
    #allocation5 [shape = 'u8[8192]{0}', space=vmem, size = 0x2000, scoped, tag = 'input window, operand 0, single buffered']
    #allocation6 [shape = 's32[1]{0}', space=sflag, size = 0x4, scoped, tag = 'scoped memory for tpu_custom_call.1']
    #allocation7 [shape = 's32[1]{0}', space=sflag, size = 0x4, scoped, tag = 'scoped memory for tpu_custom_call.1']
    #allocation8 [shape = 'u8[8192]{0}', space=vmem, size = 0x2000, scoped, tag = 'input window, operand 1, single buffered']
    #allocation9 [shape = 's32[1]{0}', space=sflag, size = 0x4, scoped, tag = 'scoped memory for tpu_custom_call.1']
    #allocation10 [shape = 'u8[16384]{0}', space=vmem, size = 0x4000, scoped, tag = 'input window, operand 2, single buffered']
    #allocation11 [shape = 'u8[16384]{0}', space=vmem, size = 0x4000, scoped, tag = 'input window, operand 4, single buffered']
    #allocation12 [shape = 's32[1]{0}', space=sflag, size = 0x4, scoped, tag = 'scoped memory for tpu_custom_call.1']
    #allocation13 [shape = 'u8[16384]{0}', space=vmem, size = 0x4000, scoped, tag = 'input window, operand 6, single buffered']
    #allocation14 [shape = 'u8[8192]{0}', space=vmem, size = 0x2000, scoped, tag = 'output window, operand 0, single buffered']
    #allocation15 [shape = 'u8[8192]{0}', space=vmem, size = 0x2000, scoped, tag = 'output window, operand 1, single buffered']
    #allocation16 [shape = 's32[1]{0}', space=sflag, size = 0x4, scoped, tag = 'scoped memory for tpu_custom_call.1']
    %15 = vsyncpa [#allocation6], 0
    %16 = vsyncpa [#allocation9], 0
    %17 = vsyncpa [#allocation12], 0
    %18 = vsyncpa [#allocation7], 0
    %19 = vsyncpa [#allocation16], 0
    // Predicated region
    $region2: #{tpu_custom_call.1} parent=1 // pred_check
      _
    $region3: #{tpu_custom_call.1} parent=1 // pred_check_branch
      %21 = sbr.rel (0) target = $region5
    $region4: #{tpu_custom_call.1} parent=1 // pred_region
      %s23 = ssub.s32 256, 256
      %24 = vsyncadd [#allocation6], %s23
      %s25 = sshll.u32 [#allocation5], 4
      %s26 = int_to_ptr.vmem [resolvable:$true] %s25
      %31 = dma.hbm_to_vmem [thread:$0]  %s0, 256, %s26, [#allocation6], 128, 128, 8
    $region5: #{tpu_custom_call.1} parent=1 // pred_fallthru
      _
    // Predicated region
    $region6: #{tpu_custom_call.1} parent=1 // pred_check
      _
    $region7: #{tpu_custom_call.1} parent=1 // pred_check_branch
      %33 = sbr.rel (0) target = $region9
    $region8: #{tpu_custom_call.1} parent=1 // pred_region
      %s35 = ssub.s32 256, 256
      %36 = vsyncadd [#allocation9], %s35
      %s37 = sshll.u32 [#allocation8], 4
      %s38 = int_to_ptr.vmem [resolvable:$true] %s37
      %43 = dma.hbm_to_vmem [thread:$0]  %s1, 256, %s38, [#allocation9], 128, 128, 8
    $region9: #{tpu_custom_call.1} parent=1 // pred_fallthru
      _
    // Predicated region
    $region10: #{tpu_custom_call.1} parent=1 // pred_check
      _
    $region11: #{tpu_custom_call.1} parent=1 // pred_check_branch
      %45 = sbr.rel (0) target = $region13
    $region12: #{tpu_custom_call.1} parent=1 // pred_region
      %s47 = ssub.s32 512, 512
      %48 = vsyncadd [#allocation9], %s47
      %s49 = sshll.u32 [#allocation10], 4
      %s50 = int_to_ptr.vmem [resolvable:$true] %s49
      %55 = dma.hbm_to_vmem [thread:$0]  %s2, 512, %s50, [#allocation9], 64, 64, 4
    $region13: #{tpu_custom_call.1} parent=1 // pred_fallthru
      _
    // Predicated region
    $region14: #{tpu_custom_call.1} parent=1 // pred_check
      _
    $region15: #{tpu_custom_call.1} parent=1 // pred_check_branch
      %57 = sbr.rel (0) target = $region17
    $region16: #{tpu_custom_call.1} parent=1 // pred_region
      _
    $region17: #{tpu_custom_call.1} parent=1 // pred_fallthru
      _
    // Predicated region
    $region18: #{tpu_custom_call.1} parent=1 // pred_check
      _
    $region19: #{tpu_custom_call.1} parent=1 // pred_check_branch
      %59 = sbr.rel (0) target = $region21
    $region20: #{tpu_custom_call.1} parent=1 // pred_region
      %s61 = ssub.s32 512, 512
      %62 = vsyncadd [#allocation12], %s61
      %s63 = sshll.u32 [#allocation11], 4
      %s64 = int_to_ptr.vmem [resolvable:$true] %s63
      %69 = dma.hbm_to_vmem [thread:$0]  %s4, 512, %s64, [#allocation12], 64, 64, 4
    $region21: #{tpu_custom_call.1} parent=1 // pred_fallthru
      _
    // Predicated region
    $region22: #{tpu_custom_call.1} parent=1 // pred_check
      _
    $region23: #{tpu_custom_call.1} parent=1 // pred_check_branch
      %71 = sbr.rel (0) target = $region25
    $region24: #{tpu_custom_call.1} parent=1 // pred_region
      _
    $region25: #{tpu_custom_call.1} parent=1 // pred_fallthru
      _
    // Predicated region
    $region26: #{tpu_custom_call.1} parent=1 // pred_check
      _
    $region27: #{tpu_custom_call.1} parent=1 // pred_check_branch
      %73 = sbr.rel (0) target = $region29
    $region28: #{tpu_custom_call.1} parent=1 // pred_region
      %s75 = ssub.s32 512, 512
      %76 = vsyncadd [#allocation12], %s75
      %s77 = sshll.u32 [#allocation13], 4
      %s78 = int_to_ptr.vmem [resolvable:$true] %s77
      %83 = dma.hbm_to_vmem [thread:$0]  %s6, 512, %s78, [#allocation12], 64, 64, 4
    $region29: #{tpu_custom_call.1} parent=1 // pred_fallthru
      _
    // Predicated region
    $region30: #{tpu_custom_call.1} parent=1 // pred_check
      _
    $region31: #{tpu_custom_call.1} parent=1 // pred_check_branch
      %85 = sbr.rel (0) target = $region33
    $region32: #{tpu_custom_call.1} parent=1 // pred_region
      _
    $region33: #{tpu_custom_call.1} parent=1 // pred_fallthru
      _
    // Predicated region
    $region34: #{tpu_custom_call.1} parent=1 // pred_check
      _
    $region35: #{tpu_custom_call.1} parent=1 // pred_check_branch
      %87 = sbr.rel (0) target = $region37
    $region36: #{tpu_custom_call.1} parent=1 // pred_region
      %88 = dma.done [#allocation6], 256
    $region37: #{tpu_custom_call.1} parent=1 // pred_fallthru
      _
    // Predicated region
    $region38: #{tpu_custom_call.1} parent=1 // pred_check
      _
    $region39: #{tpu_custom_call.1} parent=1 // pred_check_branch
      %90 = sbr.rel (0) target = $region41
    $region40: #{tpu_custom_call.1} parent=1 // pred_region
      %91 = dma.done [#allocation9], 256
    $region41: #{tpu_custom_call.1} parent=1 // pred_fallthru
      _
    // Predicated region
    $region42: #{tpu_custom_call.1} parent=1 // pred_check
      _
    $region43: #{tpu_custom_call.1} parent=1 // pred_check_branch
      %93 = sbr.rel (0) target = $region45
    $region44: #{tpu_custom_call.1} parent=1 // pred_region
      %94 = dma.done [#allocation9], 512
    $region45: #{tpu_custom_call.1} parent=1 // pred_fallthru
      _
    // Predicated region
    $region46: #{tpu_custom_call.1} parent=1 // pred_check
      _
    $region47: #{tpu_custom_call.1} parent=1 // pred_check_branch
      %96 = sbr.rel (0) target = $region49
    $region48: #{tpu_custom_call.1} parent=1 // pred_region
      %97 = dma.done [#allocation12], 512
    $region49: #{tpu_custom_call.1} parent=1 // pred_fallthru
      _
    // Predicated region
    $region50: #{tpu_custom_call.1} parent=1 // pred_check
      _
    $region51: #{tpu_custom_call.1} parent=1 // pred_check_branch
      %99 = sbr.rel (0) target = $region53
    $region52: #{tpu_custom_call.1} parent=1 // pred_region
      %100 = dma.done [#allocation12], 512
    $region53: #{tpu_custom_call.1} parent=1 // pred_fallthru
      _
    %p102 = scmp.eq.s32.totalorder 0, 0
    // Predicated region
    $region54: #{tpu_custom_call.1} parent=1 // pred_check
      %p103 = pneg %p102
    $region55: #{tpu_custom_call.1} parent=1 // pred_check_branch
      %105 = sbr.rel (%p103) target = $region57
    $region56: #{tpu_custom_call.1} parent=1 // pred_region
      %v106 = vld [vmem:[#allocation5] sm:$0xff]
      %v107 = vld [vmem:[#allocation5 + $0x8] sm:$0xff]
      %v108 = vpack.c.bf16 %v107, %v106
      %v109 = vld [vmem:[#allocation8] sm:$0xff]
      %v110 = vld [vmem:[#allocation8 + $0x8] sm:$0xff]
      %v111 = vpack.c.bf16 %v110, %v109
      %v112 = vld [vmem:[#allocation10] sm:$0xf]
      %v113 = vld [vmem:[#allocation10 + $0x4] sm:$0xf]
      %v114 = vld [vmem:[#allocation10 + $0x8] sm:$0xf]
      %v115 = vld [vmem:[#allocation10 + $0xc] sm:$0xf]
      %v116 = vld [vmem:[#allocation10 + $0x10] sm:$0xf]
      %v117 = vld [vmem:[#allocation10 + $0x14] sm:$0xf]
      %v118 = vld [vmem:[#allocation10 + $0x18] sm:$0xf]
      %v119 = vld [vmem:[#allocation10 + $0x1c] sm:$0xf]
      %v120 = vld [vmem:[%s3] sm:$0x1]
      %v122 = vlaneseq
      %v123 = vshrl.u32 %v122, 7
      %v124 = vsub.s32 0, %v123
      %v125 = vrot.slane %v120, %v124
      %v135 = vunpack.c.l.b16 %v112
      %v136 = vunpack.c.l.b16 %v113
      %v137 = vunpack.c.l.b16 %v114
      %v138 = vunpack.c.l.b16 %v115
      %v139 = vunpack.c.l.b16 %v116
      %v140 = vunpack.c.l.b16 %v117
      %v141 = vunpack.c.l.b16 %v118
      %v142 = vunpack.c.l.b16 %v119
      %v143 = vpack.c.b16 %v136, %v135
      %v144 = vpack.c.b16 %v138, %v137
      %v145 = vpack.c.b16 %v140, %v139
      %v146 = vpack.c.b16 %v142, %v141
      %vm151 = vcmask 523264
      %v153 = vsel %vm151, %v111, 0
      %155 = vmatprep.subr.bf16.mxu0 0
      %156 = vmatpush1.bf16.msra.mxu0 %v143
      %157 = vmatprep.subr.bf16.mxu0 0
      %158 = vmatpush1.bf16.msra.mxu0 %v144
      %159 = vmatprep.subr.bf16.mxu0 0
      %160 = vmatpush1.bf16.msra.mxu0 %v145
      %161 = vmatprep.subr.bf16.mxu0 0
      %162 = vmatpush1.bf16.msra.mxu0 %v146
      %163 = vmatprep.subr.bf16.mxu0 0
      %164 = vmatpush1.bf16.msra.mxu0 0
      %165 = vmatprep.subr.bf16.mxu0 0
      %166 = vmatpush1.bf16.msra.mxu0 0
      %167 = vmatprep.subr.bf16.mxu0 0
      %168 = vmatpush1.bf16.msra.mxu0 0
      %169 = vmatprep.subr.bf16.mxu0 0
      %170 = vmatpush1.bf16.msra.mxu0 0
      %171 = vmatprep.subr.bf16.mxu0 0
      %172 = vmatpush1.bf16.msra.mxu0 0
      %173 = vmatprep.subr.bf16.mxu0 0
      %174 = vmatpush1.bf16.msra.mxu0 0
      %175 = vmatprep.subr.bf16.mxu0 0
      %176 = vmatpush1.bf16.msra.mxu0 0
      %177 = vmatprep.subr.bf16.mxu0 0
      %178 = vmatpush1.bf16.msra.mxu0 0
      %179 = vmatprep.subr.bf16.mxu0 0
      %180 = vmatpush1.bf16.msra.mxu0 0
      %181 = vmatprep.subr.bf16.mxu0 0
      %182 = vmatpush1.bf16.msra.mxu0 0
      %183 = vmatprep.subr.bf16.mxu0 0
      %184 = vmatpush1.bf16.msra.mxu0 0
      %185 = vmatprep.subr.bf16.mxu0 0
      %186 = vmatpush1.bf16.msra.mxu0 0
      %187 = vmatprep.mubr.bf16.mxu0 0
      %188 = vmatmul.mubr.bf16.gmra.mrb[0].mxu0 %v153
      %v189 = vpop.f32.mrb[0].mxu0
      %v190 = vadd.f32 %v125, %v189
      %v191 = vpop.f32.mrb[0].mxu0
      %v192 = vpop.f32.mrb[0].mxu0
      %v193 = vadd.f32 %v125, %v192
      %v194 = vpop.f32.mrb[0].mxu0
      %195 = vdwg.mxu0
      %v196 = vld [vmem:[#allocation11] sm:$0xf]
      %v197 = vld [vmem:[#allocation11 + $0x4] sm:$0xf]
      %v198 = vld [vmem:[#allocation11 + $0x8] sm:$0xf]
      %v199 = vld [vmem:[#allocation11 + $0xc] sm:$0xf]
      %v200 = vld [vmem:[#allocation11 + $0x10] sm:$0xf]
      %v201 = vld [vmem:[#allocation11 + $0x14] sm:$0xf]
      %v202 = vld [vmem:[#allocation11 + $0x18] sm:$0xf]
      %v203 = vld [vmem:[#allocation11 + $0x1c] sm:$0xf]
      %v204 = vld [vmem:[%s5] sm:$0x1]
      %v206 = vlaneseq
      %v207 = vshrl.u32 %v206, 7
      %v208 = vsub.s32 0, %v207
      %v209 = vrot.slane %v204, %v208
      %v219 = vunpack.c.l.b16 %v196
      %v220 = vunpack.c.l.b16 %v197
      %v221 = vunpack.c.l.b16 %v198
      %v222 = vunpack.c.l.b16 %v199
      %v223 = vunpack.c.l.b16 %v200
      %v224 = vunpack.c.l.b16 %v201
      %v225 = vunpack.c.l.b16 %v202
      %v226 = vunpack.c.l.b16 %v203
      %v227 = vpack.c.b16 %v220, %v219
      %v228 = vpack.c.b16 %v222, %v221
      %v229 = vpack.c.b16 %v224, %v223
      %v230 = vpack.c.b16 %v226, %v225
      %v236 = vsel %vm151, %v108, 0
      %238 = vmatprep.subr.bf16.mxu0 0
      %239 = vmatpush1.bf16.msra.mxu0 %v227
      %240 = vmatprep.subr.bf16.mxu0 0
      %241 = vmatpush1.bf16.msra.mxu0 %v228
      %242 = vmatprep.subr.bf16.mxu0 0
      %243 = vmatpush1.bf16.msra.mxu0 %v229
      %244 = vmatprep.subr.bf16.mxu0 0
      %245 = vmatpush1.bf16.msra.mxu0 %v230
      %246 = vmatprep.subr.bf16.mxu0 0
      %247 = vmatpush1.bf16.msra.mxu0 0
      %248 = vmatprep.subr.bf16.mxu0 0
      %249 = vmatpush1.bf16.msra.mxu0 0
      %250 = vmatprep.subr.bf16.mxu0 0
      %251 = vmatpush1.bf16.msra.mxu0 0
      %252 = vmatprep.subr.bf16.mxu0 0
      %253 = vmatpush1.bf16.msra.mxu0 0
      %254 = vmatprep.subr.bf16.mxu0 0
      %255 = vmatpush1.bf16.msra.mxu0 0
      %256 = vmatprep.subr.bf16.mxu0 0
      %257 = vmatpush1.bf16.msra.mxu0 0
      %258 = vmatprep.subr.bf16.mxu0 0
      %259 = vmatpush1.bf16.msra.mxu0 0
      %260 = vmatprep.subr.bf16.mxu0 0
      %261 = vmatpush1.bf16.msra.mxu0 0
      %262 = vmatprep.subr.bf16.mxu0 0
      %263 = vmatpush1.bf16.msra.mxu0 0
      %264 = vmatprep.subr.bf16.mxu0 0
      %265 = vmatpush1.bf16.msra.mxu0 0
      %266 = vmatprep.subr.bf16.mxu0 0
      %267 = vmatpush1.bf16.msra.mxu0 0
      %268 = vmatprep.subr.bf16.mxu0 0
      %269 = vmatpush1.bf16.msra.mxu0 0
      %270 = vmatprep.mubr.bf16.mxu0 0
      %271 = vmatmul.mubr.bf16.gmra.mrb[0].mxu0 %v236
      %v272 = vpop.f32.mrb[0].mxu0
      %v273 = vadd.f32 %v209, %v272
      %v274 = vpop.f32.mrb[0].mxu0
      %v275 = vpop.f32.mrb[0].mxu0
      %v276 = vadd.f32 %v209, %v275
      %v277 = vpop.f32.mrb[0].mxu0
      %278 = vdwg.mxu0
      %v279 = vmul.f32 %v190, 0.17677669
      %v280 = vmul.f32 %v193, 0.17677669
      %v281 = vpack.c.bf16 %v280, %v279
      %v283 = vunpack.c.l.b16 %v281
      %v284 = vunpack.c.h.b16 %v281
      %v285 = vpack.c.b16 %v283, %v283
      %v286 = vpack.c.b16 %v284, %v284
      %v289 = vpack.c.bf16 %v193, %v190
      %v291 = vunpack.c.l.b16 %v289
      %v292 = vunpack.c.h.b16 %v289
      %v293 = vpack.c.b16 %v291, %v291
      %v294 = vpack.c.b16 %v292, %v292
      %v297 = vpack.c.bf16 %v276, %v273
      %v299 = vunpack.c.l.b16 %v297
      %v300 = vunpack.c.h.b16 %v297
      %v301 = vpack.c.b16 %v299, %v299
      %v302 = vpack.c.b16 %v300, %v300
      %v305 = vlaneseq
      %v306 = vand.u32 %v305, 127
      %vm307 = vcmp.lt.s32.totalorder %v306, 32
      %v308 = vsel %vm307, 1, 0
      %v309 = vcvt.s32.f32 %v308
      %v310 = vpack.c.bf16 %v309, %v309
      %vm311 = vcmp.ge.s32.totalorder %v306, 32
      %v312 = vsel %vm311, 1, 0
      %v313 = vcvt.s32.f32 %v312
      %v314 = vpack.c.bf16 %v313, %v313
      %vm315 = vcmask 519168
      %316 = vst.msk [vmem:[#allocation2] sm:$0xf] %vm315, %v285
      %317 = vst.msk [vmem:[#allocation2 + $0x4] sm:$0xf] %vm315, %v286
      %v318 = vmul.bf16 %v301, %v310
      %v319 = vmul.bf16 %v302, %v310
      %v320 = vmul.bf16 %v301, %v314
      %v321 = vmul.bf16 %v302, %v314
      %v324 = vunpack.c.l.b16 %v320
      %v325 = vunpack.c.l.b16 %v321
      %v326 = vpack.c.b16 %v324, %v324
      %v327 = vpack.c.b16 %v325, %v325
      %vm328 = vcmask 1043456
      %v331 = vsel %vm328, %v318, %v326
      %v335 = vsel %vm328, %v319, %v327
      %337 = vst.msk [vmem:[#allocation3] sm:$0xff] %vm151, %v331
      %338 = vst.msk [vmem:[#allocation3 + $0x8] sm:$0xff] %vm151, %v335
      %v340 = vunpack.c.l.b16 %v310
      %v341 = vpack.c.b16 %v340, %v340
      %342 = vrot.lane.b32.xlu0 %v341, 64
      %v343 = vpop.permute.xlu0 %342
      %v345 = vmul.bf16 %v293, %v343
      %v346 = vmul.bf16 %v294, %v343
      %v348 = vunpack.c.l.b16 %v314
      %v349 = vpack.c.b16 %v348, %v348
      %350 = vrot.lane.b32.xlu0 %v349, 64
      %v351 = vpop.permute.xlu0 %350
      %v353 = vmul.bf16 %v293, %v351
      %v354 = vmul.bf16 %v294, %v351
      %v357 = vunpack.c.l.b16 %v353
      %v358 = vunpack.c.l.b16 %v354
      %v359 = vpack.c.b16 %v357, %v357
      %v360 = vpack.c.b16 %v358, %v358
      %v363 = vsel %vm328, %v345, %v359
      %v366 = vsel %vm328, %v346, %v360
      %369 = vrot.lane.b32.xlu0 %v363, 64
      %v370 = vpop.permute.xlu0 %369
      %371 = vrot.lane.b32.xlu0 %v366, 64
      %v372 = vpop.permute.xlu0 %371
      %375 = vst.msk [vmem:[#allocation4] sm:$0xff] %vm151, %v370
      %376 = vst.msk [vmem:[#allocation4 + $0x8] sm:$0xff] %vm151, %v372
    $region57: #{tpu_custom_call.1} parent=1 // pred_fallthru
      _
    %s377 = smul.u32 0, 8
    %s378 = sshra.s32 %s377, 3
    %s379 = sand.u32 %s377, 7
    %s380 = smul.addr %s378, 4
    %s381 = scalar_lea.vmem [#allocation2], %s380
    %v382 = vld [vmem:[%s381] sm:$0xf]
    %v383 = vld [vmem:[%s381 + $0x4] sm:$0xf]
    %v384 = vld [vmem:[#allocation3] sm:$0xff]
    %v385 = vld [vmem:[#allocation3 + $0x8] sm:$0xff]
    %vm386 = vcmask 523264
    %v388 = vsel %vm386, %v382, 0
    %v391 = vsel %vm386, %v384, 0
    %393 = vmatprep.subr.bf16.mxu0 0
    %394 = vmatpush1.bf16.xpose.msra.mxu0 %v391
    %395 = vmatprep.subr.bf16.mxu0 0
    %396 = vmatpush1.bf16.xpose.msra.mxu0 0
    %397 = vmatprep.subr.bf16.mxu0 0
    %398 = vmatpush1.bf16.xpose.msra.mxu0 0
    %399 = vmatprep.subr.bf16.mxu0 0
    %400 = vmatpush1.bf16.xpose.msra.mxu0 0
    %401 = vmatprep.subr.bf16.mxu0 0
    %402 = vmatpush1.bf16.xpose.msra.mxu0 0
    %403 = vmatprep.subr.bf16.mxu0 0
    %404 = vmatpush1.bf16.xpose.msra.mxu0 0
    %405 = vmatprep.subr.bf16.mxu0 0
    %406 = vmatpush1.bf16.xpose.msra.mxu0 0
    %407 = vmatprep.subr.bf16.mxu0 0
    %408 = vmatpush1.bf16.xpose.msra.mxu0 0
    %409 = vmatprep.subr.bf16.mxu0 0
    %410 = vmatpush1.bf16.xpose.msra.mxu0 0
    %411 = vmatprep.subr.bf16.mxu0 0
    %412 = vmatpush1.bf16.xpose.msra.mxu0 0
    %413 = vmatprep.subr.bf16.mxu0 0
    %414 = vmatpush1.bf16.xpose.msra.mxu0 0
    %415 = vmatprep.subr.bf16.mxu0 0
    %416 = vmatpush1.bf16.xpose.msra.mxu0 0
    %417 = vmatprep.subr.bf16.mxu0 0
    %418 = vmatpush1.bf16.xpose.msra.mxu0 0
    %419 = vmatprep.subr.bf16.mxu0 0
    %420 = vmatpush1.bf16.xpose.msra.mxu0 0
    %421 = vmatprep.subr.bf16.mxu0 0
    %422 = vmatpush1.bf16.xpose.msra.mxu0 0
    %423 = vmatprep.subr.bf16.mxu0 0
    %424 = vmatpush1.bf16.xpose.msra.mxu0 0
    %425 = vmatprep.mubr.bf16.mxu0 0
    %426 = vmatmul.mubr.bf16.gmra.mrb[0].mxu0 %v388
    %v427 = vpop.f32.mrb[0].mxu0
    %v428 = vadd.f32 0.0, %v427
    %v429 = vpop.f32.mrb[0].mxu0
    %v430 = vpop.f32.mrb[0].mxu0
    %v431 = vpop.f32.mrb[0].mxu0
    %432 = vdwg.mxu0
    %v434 = vsel %vm386, %v383, 0
    %v437 = vsel %vm386, %v385, 0
    %439 = vmatprep.subr.bf16.mxu0 0
    %440 = vmatpush1.bf16.xpose.msra.mxu0 %v437
    %441 = vmatprep.subr.bf16.mxu0 0
    %442 = vmatpush1.bf16.xpose.msra.mxu0 0
    %443 = vmatprep.subr.bf16.mxu0 0
    %444 = vmatpush1.bf16.xpose.msra.mxu0 0
    %445 = vmatprep.subr.bf16.mxu0 0
    %446 = vmatpush1.bf16.xpose.msra.mxu0 0
    %447 = vmatprep.subr.bf16.mxu0 0
    %448 = vmatpush1.bf16.xpose.msra.mxu0 0
    %449 = vmatprep.subr.bf16.mxu0 0
    %450 = vmatpush1.bf16.xpose.msra.mxu0 0
    %451 = vmatprep.subr.bf16.mxu0 0
    %452 = vmatpush1.bf16.xpose.msra.mxu0 0
    %453 = vmatprep.subr.bf16.mxu0 0
    %454 = vmatpush1.bf16.xpose.msra.mxu0 0
    %455 = vmatprep.subr.bf16.mxu0 0
    %456 = vmatpush1.bf16.xpose.msra.mxu0 0
    %457 = vmatprep.subr.bf16.mxu0 0
    %458 = vmatpush1.bf16.xpose.msra.mxu0 0
    %459 = vmatprep.subr.bf16.mxu0 0
    %460 = vmatpush1.bf16.xpose.msra.mxu0 0
    %461 = vmatprep.subr.bf16.mxu0 0
    %462 = vmatpush1.bf16.xpose.msra.mxu0 0
    %463 = vmatprep.subr.bf16.mxu0 0
    %464 = vmatpush1.bf16.xpose.msra.mxu0 0
    %465 = vmatprep.subr.bf16.mxu0 0
    %466 = vmatpush1.bf16.xpose.msra.mxu0 0
    %467 = vmatprep.subr.bf16.mxu0 0
    %468 = vmatpush1.bf16.xpose.msra.mxu0 0
    %469 = vmatprep.subr.bf16.mxu0 0
    %470 = vmatpush1.bf16.xpose.msra.mxu0 0
    %471 = vmatprep.mubr.bf16.mxu0 0
    %472 = vmatmul.mubr.bf16.gmra.mrb[0].mxu0 %v434
    %v473 = vpop.f32.mrb[0].mxu0
    %v474 = vadd.f32 0.0, %v473
    %v475 = vpop.f32.mrb[0].mxu0
    %v476 = vpop.f32.mrb[0].mxu0
    %v477 = vpop.f32.mrb[0].mxu0
    %478 = vdwg.mxu0
    %vm479 = vcmask 64512
    %v480 = vsel %vm479, %v428, -inf
    %481 = vmax.xlane.f32.xlu0 %v480
    %v482 = vpop.xlane.xlu0 %481
    %v483 = vsel %vm479, %v474, -inf
    %484 = vmax.xlane.f32.xlu0 %v483
    %v485 = vpop.xlane.xlu0 %484
    %v486 = vsub.f32 %v428, %v482
    %v487 = vsub.f32 %v474, %v485
    %v488 = vmul.f32 %v486, 1.442695
    %v489 = vpow.pop %v488
    %v490 = vmul.f32 %v487, 1.442695
    %v491 = vpow.pop %v490
    %v492 = vsel %vm479, %v489, 0.0
    %493 = vadd.xlane.f32.xlu0 %v492
    %v494 = vpop.xlane.xlu0 %493
    %v495 = vsel %vm479, %v491, 0.0
    %496 = vadd.xlane.f32.xlu0 %v495
    %v497 = vpop.xlane.xlu0 %496
    %v498 = vrcp.pop %v494
    %v499 = vrcp.pop %v497
    %v500 = vmul.f32 %v489, %v498
    %v501 = vmul.f32 %v491, %v499
    %vm502 = vcmask 130112
    %v503 = vsel %vm502, %v428, -inf
    %504 = vmax.xlane.f32.xlu0 %v503
    %v505 = vpop.xlane.xlu0 %504
    %v506 = vsel %vm502, %v474, -inf
    %507 = vmax.xlane.f32.xlu0 %v506
    %v508 = vpop.xlane.xlu0 %507
    %v509 = vsub.f32 %v428, %v505
    %v510 = vsub.f32 %v474, %v508
    %v511 = vmul.f32 %v509, 1.442695
    %v512 = vpow.pop %v511
    %v513 = vmul.f32 %v510, 1.442695
    %v514 = vpow.pop %v513
    %517 = vrot.lane.b32.xlu0 %v512, 120
    %v518 = vpop.permute.xlu0 %517
    %519 = vrot.lane.b32.xlu0 %v514, 120
    %v520 = vpop.permute.xlu0 %519
    %v523 = vsel %vm479, %v518, 0.0
    %524 = vadd.xlane.f32.xlu0 %v523
    %v525 = vpop.xlane.xlu0 %524
    %v526 = vsel %vm479, %v520, 0.0
    %527 = vadd.xlane.f32.xlu0 %v526
    %v528 = vpop.xlane.xlu0 %527
    %v529 = vrcp.pop %v525
    %v530 = vrcp.pop %v528
    %v531 = vmul.f32 %v512, %v529
    %v532 = vmul.f32 %v514, %v530
    %v533 = vpack.c.bf16 %v500, %v500
    %v534 = vpack.c.bf16 %v501, %v501
    %vm535 = vcmask 60416
    %536 = vst.msk [vmem:[#allocation15] sm:$0xf] %vm535, %v533
    %537 = vst.msk [vmem:[#allocation15 + $0x8] sm:$0xf] %vm535, %v534
    %v538 = vpack.c.bf16 %v531, %v531
    %v539 = vpack.c.bf16 %v532, %v532
    %v542 = vunpack.c.l.b16 %v538
    %v543 = vunpack.c.l.b16 %v539
    %v544 = vpack.c.b16 %v542, %v542
    %v545 = vpack.c.b16 %v543, %v543
    %546 = vrot.lane.b32.xlu0 %v544, 120
    %v547 = vpop.permute.xlu0 %546
    %548 = vrot.lane.b32.xlu0 %v545, 120
    %v549 = vpop.permute.xlu0 %548
    %s552 = scalar_lea.vmem [#allocation15], 4
    %553 = vst.msk [vmem:[%s552] sm:$0xf] %vm535, %v547
    %554 = vst.msk [vmem:[%s552 + $0x8] sm:$0xf] %vm535, %v549
    %v555 = vsel %vm479, %v500, %v531
    %v556 = vsel %vm479, %v501, %v532
    %v557 = vpack.c.bf16 %v555, %v555
    %v558 = vpack.c.bf16 %v556, %v556
    %v559 = vld [vmem:[#allocation4] sm:$0xff]
    %v560 = vld [vmem:[#allocation4 + $0x8] sm:$0xff]
    %vm561 = vcmask 130048
    %v563 = vsel %vm561, %v557, 0
    %565 = vmatprep.subr.bf16.mxu0 0
    %566 = vmatpush1.bf16.msra.mxu0 %v559
    %567 = vmatprep.subr.bf16.mxu0 0
    %568 = vmatpush1.bf16.msra.mxu0 0
    %569 = vmatprep.subr.bf16.mxu0 0
    %570 = vmatpush1.bf16.msra.mxu0 0
    %571 = vmatprep.subr.bf16.mxu0 0
    %572 = vmatpush1.bf16.msra.mxu0 0
    %573 = vmatprep.subr.bf16.mxu0 0
    %574 = vmatpush1.bf16.msra.mxu0 0
    %575 = vmatprep.subr.bf16.mxu0 0
    %576 = vmatpush1.bf16.msra.mxu0 0
    %577 = vmatprep.subr.bf16.mxu0 0
    %578 = vmatpush1.bf16.msra.mxu0 0
    %579 = vmatprep.subr.bf16.mxu0 0
    %580 = vmatpush1.bf16.msra.mxu0 0
    %581 = vmatprep.subr.bf16.mxu0 0
    %582 = vmatpush1.bf16.msra.mxu0 0
    %583 = vmatprep.subr.bf16.mxu0 0
    %584 = vmatpush1.bf16.msra.mxu0 0
    %585 = vmatprep.subr.bf16.mxu0 0
    %586 = vmatpush1.bf16.msra.mxu0 0
    %587 = vmatprep.subr.bf16.mxu0 0
    %588 = vmatpush1.bf16.msra.mxu0 0
    %589 = vmatprep.subr.bf16.mxu0 0
    %590 = vmatpush1.bf16.msra.mxu0 0
    %591 = vmatprep.subr.bf16.mxu0 0
    %592 = vmatpush1.bf16.msra.mxu0 0
    %593 = vmatprep.subr.bf16.mxu0 0
    %594 = vmatpush1.bf16.msra.mxu0 0
    %595 = vmatprep.subr.bf16.mxu0 0
    %596 = vmatpush1.bf16.msra.mxu0 0
    %597 = vmatprep.mubr.bf16.mxu0 0
    %598 = vmatmul.mubr.bf16.gmra.mrb[0].mxu0 %v563
    %v599 = vpop.f32.mrb[0].mxu0
    %v600 = vadd.f32 0.0, %v599
    %v601 = vpop.f32.mrb[0].mxu0
    %v602 = vpop.f32.mrb[0].mxu0
    %v603 = vpop.f32.mrb[0].mxu0
    %604 = vdwg.mxu0
    %v606 = vsel %vm561, %v558, 0
    %608 = vmatprep.subr.bf16.mxu0 0
    %609 = vmatpush1.bf16.msra.mxu0 %v560
    %610 = vmatprep.subr.bf16.mxu0 0
    %611 = vmatpush1.bf16.msra.mxu0 0
    %612 = vmatprep.subr.bf16.mxu0 0
    %613 = vmatpush1.bf16.msra.mxu0 0
    %614 = vmatprep.subr.bf16.mxu0 0
    %615 = vmatpush1.bf16.msra.mxu0 0
    %616 = vmatprep.subr.bf16.mxu0 0
    %617 = vmatpush1.bf16.msra.mxu0 0
    %618 = vmatprep.subr.bf16.mxu0 0
    %619 = vmatpush1.bf16.msra.mxu0 0
    %620 = vmatprep.subr.bf16.mxu0 0
    %621 = vmatpush1.bf16.msra.mxu0 0
    %622 = vmatprep.subr.bf16.mxu0 0
    %623 = vmatpush1.bf16.msra.mxu0 0
    %624 = vmatprep.subr.bf16.mxu0 0
    %625 = vmatpush1.bf16.msra.mxu0 0
    %626 = vmatprep.subr.bf16.mxu0 0
    %627 = vmatpush1.bf16.msra.mxu0 0
    %628 = vmatprep.subr.bf16.mxu0 0
    %629 = vmatpush1.bf16.msra.mxu0 0
    %630 = vmatprep.subr.bf16.mxu0 0
    %631 = vmatpush1.bf16.msra.mxu0 0
    %632 = vmatprep.subr.bf16.mxu0 0
    %633 = vmatpush1.bf16.msra.mxu0 0
    %634 = vmatprep.subr.bf16.mxu0 0
    %635 = vmatpush1.bf16.msra.mxu0 0
    %636 = vmatprep.subr.bf16.mxu0 0
    %637 = vmatpush1.bf16.msra.mxu0 0
    %638 = vmatprep.subr.bf16.mxu0 0
    %639 = vmatpush1.bf16.msra.mxu0 0
    %640 = vmatprep.mubr.bf16.mxu0 0
    %641 = vmatmul.mubr.bf16.gmra.mrb[0].mxu0 %v606
    %v642 = vpop.f32.mrb[0].mxu0
    %v643 = vadd.f32 0.0, %v642
    %v644 = vpop.f32.mrb[0].mxu0
    %v645 = vpop.f32.mrb[0].mxu0
    %v646 = vpop.f32.mrb[0].mxu0
    %647 = vdwg.mxu0
    %v648 = vpack.c.bf16 %v643, %v600
    %v649 = vld [vmem:[#allocation13] sm:$0xf]
    %v650 = vld [vmem:[#allocation13 + $0x4] sm:$0xf]
    %v651 = vld [vmem:[#allocation13 + $0x8] sm:$0xf]
    %v652 = vld [vmem:[#allocation13 + $0xc] sm:$0xf]
    %v653 = vld [vmem:[#allocation13 + $0x10] sm:$0xf]
    %v654 = vld [vmem:[#allocation13 + $0x14] sm:$0xf]
    %v655 = vld [vmem:[#allocation13 + $0x18] sm:$0xf]
    %v656 = vld [vmem:[#allocation13 + $0x1c] sm:$0xf]
    %v657 = vld [vmem:[%s7] sm:$0x1]
    %v659 = vlaneseq
    %v660 = vshrl.u32 %v659, 7
    %v661 = vsub.s32 0, %v660
    %v662 = vrot.slane %v657, %v661
    %v672 = vunpack.c.l.b16 %v649
    %v673 = vunpack.c.l.b16 %v650
    %v674 = vunpack.c.l.b16 %v651
    %v675 = vunpack.c.l.b16 %v652
    %v676 = vunpack.c.l.b16 %v653
    %v677 = vunpack.c.l.b16 %v654
    %v678 = vunpack.c.l.b16 %v655
    %v679 = vunpack.c.l.b16 %v656
    %v680 = vpack.c.b16 %v673, %v672
    %v681 = vpack.c.b16 %v675, %v674
    %v682 = vpack.c.b16 %v677, %v676
    %v683 = vpack.c.b16 %v679, %v678
    %v689 = vsel %vm386, %v648, 0
    %691 = vmatprep.subr.bf16.mxu0 0
    %692 = vmatpush1.bf16.msra.mxu0 %v680
    %693 = vmatprep.subr.bf16.mxu0 0
    %694 = vmatpush1.bf16.msra.mxu0 %v681
    %695 = vmatprep.subr.bf16.mxu0 0
    %696 = vmatpush1.bf16.msra.mxu0 %v682
    %697 = vmatprep.subr.bf16.mxu0 0
    %698 = vmatpush1.bf16.msra.mxu0 %v683
    %699 = vmatprep.subr.bf16.mxu0 0
    %700 = vmatpush1.bf16.msra.mxu0 0
    %701 = vmatprep.subr.bf16.mxu0 0
    %702 = vmatpush1.bf16.msra.mxu0 0
    %703 = vmatprep.subr.bf16.mxu0 0
    %704 = vmatpush1.bf16.msra.mxu0 0
    %705 = vmatprep.subr.bf16.mxu0 0
    %706 = vmatpush1.bf16.msra.mxu0 0
    %707 = vmatprep.subr.bf16.mxu0 0
    %708 = vmatpush1.bf16.msra.mxu0 0
    %709 = vmatprep.subr.bf16.mxu0 0
    %710 = vmatpush1.bf16.msra.mxu0 0
    %711 = vmatprep.subr.bf16.mxu0 0
    %712 = vmatpush1.bf16.msra.mxu0 0
    %713 = vmatprep.subr.bf16.mxu0 0
    %714 = vmatpush1.bf16.msra.mxu0 0
    %715 = vmatprep.subr.bf16.mxu0 0
    %716 = vmatpush1.bf16.msra.mxu0 0
    %717 = vmatprep.subr.bf16.mxu0 0
    %718 = vmatpush1.bf16.msra.mxu0 0
    %719 = vmatprep.subr.bf16.mxu0 0
    %720 = vmatpush1.bf16.msra.mxu0 0
    %721 = vmatprep.subr.bf16.mxu0 0
    %722 = vmatpush1.bf16.msra.mxu0 0
    %723 = vmatprep.mubr.bf16.mxu0 0
    %724 = vmatmul.mubr.bf16.gmra.mrb[0].mxu0 %v689
    %v725 = vpop.f32.mrb[0].mxu0
    %v726 = vadd.f32 %v662, %v725
    %v727 = vpop.f32.mrb[0].mxu0
    %v728 = vpop.f32.mrb[0].mxu0
    %v729 = vadd.f32 %v662, %v728
    %v730 = vpop.f32.mrb[0].mxu0
    %731 = vdwg.mxu0
    %732 = vst.msk [vmem:[#allocation14] sm:$0xff] %vm386, %v726
    %733 = vst.msk [vmem:[#allocation14 + $0x8] sm:$0xff] %vm386, %v729
    // Predicated region
    $region58: #{tpu_custom_call.1} parent=1 // pred_check
      _
    $region59: #{tpu_custom_call.1} parent=1 // pred_check_branch
      %735 = sbr.rel (0) target = $region61
    $region60: #{tpu_custom_call.1} parent=1 // pred_region
      %s737 = ssub.s32 256, 256
      %738 = vsyncadd [#allocation7], %s737
      %s739 = sshll.u32 [#allocation14], 4
      %s740 = int_to_ptr.vmem [resolvable:$true] %s739
      %745 = dma.vmem_to_hbm [thread:$0]  %s740, 256, %s8, [#allocation7], 128, 128, 8
    $region61: #{tpu_custom_call.1} parent=1 // pred_fallthru
      _
    // Predicated region
    $region62: #{tpu_custom_call.1} parent=1 // pred_check
      _
    $region63: #{tpu_custom_call.1} parent=1 // pred_check_branch
      %747 = sbr.rel (0) target = $region65
    $region64: #{tpu_custom_call.1} parent=1 // pred_region
      %s749 = ssub.s32 256, 256
      %750 = vsyncadd [#allocation16], %s749
      %s751 = sshll.u32 [#allocation15], 4
      %s752 = int_to_ptr.vmem [resolvable:$true] %s751
      %757 = dma.vmem_to_hbm [thread:$0]  %s752, 256, %s9, [#allocation16], 64, 64, 4
    $region65: #{tpu_custom_call.1} parent=1 // pred_fallthru
      _
    // Predicated region
    $region66: #{tpu_custom_call.1} parent=1 // pred_check
      _
    $region67: #{tpu_custom_call.1} parent=1 // pred_check_branch
      %759 = sbr.rel (0) target = $region69
    $region68: #{tpu_custom_call.1} parent=1 // pred_region
      %760 = dma.done [#allocation7], 256
    $region69: #{tpu_custom_call.1} parent=1 // pred_fallthru
      _
    // Predicated region
    $region70: #{tpu_custom_call.1} parent=1 // pred_check
      _
    $region71: #{tpu_custom_call.1} parent=1 // pred_check_branch
      %762 = sbr.rel (0) target = $region73
    $region72: #{tpu_custom_call.1} parent=1 // pred_region
      %763 = dma.done [#allocation16], 256
    $region73: #{tpu_custom_call.1} parent=1 // pred_fallthru
      _
    %764 = vsyncpa [#allocation6], 1
    %765 = vsyncpa [#allocation9], 1
    %766 = vsyncpa [#allocation12], 1
    %767 = vsyncpa [#allocation7], 1
    %768 = vsyncpa [#allocation16], 1

</llo_original>
